<compile_context>
chip_gen: v5e
topology: v5e:2x2
jax: 0.10.0
libtpu: 0.0.40
codegen_flags: <defaults>
</compile_context>

<pallas_src>
import functools

import numpy as np
import jax
import jax.numpy as jnp
from jax import lax
from jax.experimental import pallas as pl
from jax.experimental.pallas import tpu as pltpu


def _charcnn_kernel(x_ref, w_ref, b_ref, o_ref, *, meta, max_group_rows):
    """Fused CharCNN forward for one batch tile.

    x_ref : (tile_n, Cin*W)  f32   chars, natural (batch-major) layout
    w_ref : (m_total, Cin*W) bf16  block-Toeplitz conv weights, all layers;
                                   row index = row_off_l + t*cout_l + c
    b_ref : (c_total, 1)     f32   concatenated (padded) biases
    o_ref : (tile_n, c_total)      pooled tanh features, batch-major
    meta  : static per-layer tuples (row_off, out_off, cout_pad, w_out)
    """
    # One shared operand transpose (XLU, otherwise idle) + bf16 cast so every
    # dot below is a plain (M, K) x (K, N) MXU matmul with K = Cin*W packed.
    xt = jnp.transpose(x_ref[...]).astype(jnp.bfloat16)       # (Cin*W, tile_n)

    parts = []
    for row_off, out_off, cout, w_out in meta:
        tpg = max(1, max_group_rows // cout)      # conv positions per dot
        pooled = None
        for t0 in range(0, w_out, tpg):           # static unroll
            g = min(tpg, w_out - t0)
            r0 = row_off + t0 * cout
            wg = w_ref[r0:r0 + g * cout, :]       # (g*cout, K) bf16, 8-aligned
            y = lax.dot_general(                  # MXU: K = Cin*W fully packed
                wg, xt, dimension_numbers=(((1,), (0,)), ((), ())),
                preferred_element_type=jnp.float32)            # (g*cout, tile_n)
            for j in range(g):                    # sublane-aligned max fold (VPU)
                blk = y[j * cout:(j + 1) * cout, :]
                pooled = blk if pooled is None else jnp.maximum(pooled, blk)
        # tanh is monotone and the bias is width-constant, so pooling the
        # PRE-activation and applying bias + tanh once is exact.
        bias = b_ref[out_off:out_off + cout, :]                # (cout, 1) f32
        parts.append(jnp.tanh(pooled + bias))                  # (cout, tile_n)
    feat = parts[0] if len(parts) == 1 else jnp.concatenate(parts, axis=0)
    # Transpose back to batch-major in-kernel (XLU) so the wrapper needs no
    # extra HBM pass; store in the (narrow) output dtype.
    o_ref[...] = jnp.transpose(feat).astype(o_ref.dtype)       # (tile_n, c_total)


def _pick_tile_n(n):
    # Large lane/sublane-dense tiles amortize the ~0.35 us per-grid-step
    # overhead, but keep >= 4 grid steps when possible so both v7x TensorCores
    # get >= 2 steady-state pipeline steps, and cap at 512 so per-dot f32
    # results stay <= 32 vregs.
    for t in (512, 256, 128):
        if n >= 4 * t:
            return t
    if n >= 128:
        return 128
    return max(8, -(-n // 8) * 8)         # tiny batch: one (padded) block


def charcnn_forward(x_nchw, weights, biases, *, out_dtype=jnp.bfloat16):
    """Pallas equivalent of CharCNN.forward(x).

    x_nchw : (N, Cin, 1, W)
    weights: list of Conv2d weights (Cout_l, Cin, 1, KW_l)
    biases : list of Conv2d biases  (Cout_l,)
    returns: (N, sum(Cout_l)) in `out_dtype` (tanh output fits bf16; cast
             downstream only if the consumer needs f32).
    """
    N, cin, H, W = x_nchw.shape
    assert H == 1, "CharCNN uses kernel height 1; expecting H == 1"
    kws = [int(w.shape[-1]) for w in weights]
    couts = [int(w.shape[0]) for w in weights]
    assert all(1 <= k <= W for k in kws), "kernel width must be <= word length"
    K = cin * W

    # x in its natural layout: (N, Cin, 1, W) -> (N, Cin*W) is a zero-copy
    # reshape (column index = ci*W + w); bf16 cast happens in-kernel, so the
    # kernel's own DMA is the only HBM pass over x.
    x2 = x_nchw.reshape(N, K)

    tile_n = _pick_tile_n(N)
    n_pad = -(-N // tile_n) * tile_n
    if n_pad != N:
        x2 = jnp.pad(x2, ((0, n_pad - N), (0, 0)))
    grid = (n_pad // tile_n,)

    # ---- pack all layers into ONE block-Toeplitz weight + ONE bias array ----
    # (Weight-sized ops only; in a real model this packing is done once at
    # parameter-load time, not per forward.)
    couts_pad = [-(-c // 8) * 8 for c in couts]       # 8-align sublane groups
    w_rows, b_rows, meta = [], [], []
    row_off = out_off = 0
    for w, b, kw, cout, cpad in zip(weights, biases, kws, couts, couts_pad):
        w_out = W - kw + 1
        w3 = w[:, :, 0, :]                                     # (cout, cin, kw)
        if cpad != cout:
            w3 = jnp.pad(w3, ((0, cpad - cout), (0, 0), (0, 0)))
        for t in range(w_out):   # row (t, c): weight[c, ci, k] at col ci*W+(t+k)
            blk = jnp.pad(w3, ((0, 0), (0, 0), (t, W - kw - t)))   # (cpad,cin,W)
            w_rows.append(blk.reshape(cpad, K))
        bb = b.reshape(-1, 1).astype(jnp.float32)
        if cpad != cout:
            bb = jnp.pad(bb, ((0, cpad - cout), (0, 0)))
        b_rows.append(bb)
        meta.append((row_off, out_off, cpad, w_out))
        row_off += w_out * cpad
        out_off += cpad
    w_all = jnp.concatenate(w_rows, axis=0).astype(jnp.bfloat16)   # (m_total, K)
    b_all = jnp.concatenate(b_rows, axis=0)                         # (c_total, 1)
    m_total, c_total = row_off, out_off

    # Cap per-dot result at <= 32 vregs of f32 (32 * 1024 elems) to stay out
    # of the spill regime (matters most on v5e's single vst slot).
    max_group_rows = max(8, min(128, 32768 // tile_n))

    kernel = functools.partial(_charcnn_kernel, meta=tuple(meta),
                               max_group_rows=max_group_rows)

    out = pl.pallas_call(
        kernel,
        out_shape=jax.ShapeDtypeStruct((n_pad, c_total), out_dtype),
        grid=grid,
        in_specs=[
            pl.BlockSpec((tile_n, K), lambda i: (i, 0)),        # batch tile
            pl.BlockSpec((m_total, K), lambda i: (0, 0)),       # resident weights
            pl.BlockSpec((c_total, 1), lambda i: (0, 0)),       # resident biases
        ],
        out_specs=pl.BlockSpec((tile_n, c_total), lambda i: (i, 0)),
        compiler_params=pltpu.CompilerParams(
            dimension_semantics=("parallel",),       # megacore-shard the batch
            vmem_limit_bytes=32 * 1024 * 1024),
    )(x2, w_all, b_all)

    if n_pad != N:
        out = out[:N]
    if any(cp != c for cp, c in zip(couts_pad, couts)):
        pieces, off = [], 0
        for c, cp in zip(couts, couts_pad):
            pieces.append(out[:, off:off + c])
            off += cp
        out = jnp.concatenate(pieces, axis=1)
    return out
    # Note: the original CharCNN.forward indexes outputs[1] when there is a
    # single layer (a bug); here the single-layer case returns that layer.


def _reference(x_nchw, weights, biases):
    outs = []
    for w, b in zip(weights, biases):
        conv = lax.conv_general_dilated(
            x_nchw, w, window_strides=(1, 1), padding="VALID",
            dimension_numbers=("NCHW", "OIHW", "NCHW"))    # (N, Cout, 1, W_out)
        act = jnp.tanh(conv + b[None, :, None, None])
        pooled = jnp.max(act, axis=3)                       # reduce_length = W_out
        outs.append(pooled[:, :, 0])                        # (N, Cout)
    return jnp.concatenate(outs, axis=1) if len(outs) > 1 else outs[0]


if __name__ == "__main__":
    # Shapes consistent with CharCNN usage: char embedding size 4, H=1,
    # max word length 16, kernel widths [1, 2, 3] with [16, 32, 32] filters.
    # Batch of 512 words -> tile_n=128, grid=(4,) (>= 2 steps per v7x core).
    N, Cin, W = 512, 4, 16
    kernels = [1, 2, 3]
    kernel_features = [16, 32, 32]

    key = jax.random.PRNGKey(0)
    kx, key = jax.random.split(key)
    x = jax.random.normal(kx, (N, Cin, 1, W), dtype=jnp.float32)

    weights, biases = [], []
    for kw, cout in zip(kernels, kernel_features):
        key, k1, k2 = jax.random.split(key, 3)
        fan_in = Cin * 1 * kw
        bound = 1.0 / np.sqrt(fan_in)
        weights.append(jax.random.uniform(k1, (cout, Cin, 1, kw), jnp.float32,
                                          -bound, bound))
        biases.append(jax.random.uniform(k2, (cout,), jnp.float32, -bound, bound))

    fwd = jax.jit(functools.partial(charcnn_forward, out_dtype=jnp.bfloat16))
    out = fwd(x, weights, biases)
    out = jax.block_until_ready(out)

    assert out.shape == (N, sum(kernel_features)), out.shape
    ref = np.asarray(_reference(x, weights, biases))
    # bf16 inputs + bf16 output (tanh in [-1, 1]) -> loosened tolerance.
    np.testing.assert_allclose(np.asarray(out).astype(np.float32), ref,
                               rtol=2e-2, atol=2e-2)

    print("KERNEL_OK")
</pallas_src>

<mosaic_0001>
module attributes {stable_mosaic.version = 11 : i64} {
  func.func @_charcnn_kernel(%arg0: i32, %arg1: memref<128x64xf32, #tpu.memory_space<vmem>>, %arg2: memref<1184x64xbf16, #tpu.memory_space<vmem>>, %arg3: memref<80x1xf32, #tpu.memory_space<vmem>>, %arg4: memref<128x80xbf16, #tpu.memory_space<vmem>>) attributes {dimension_semantics = [#tpu.dimension_semantics<parallel>], iteration_bounds = array<i64: 4>, scalar_prefetch = 0 : i64, scratch_operands = 0 : i64, tpu.core_type = #tpu.core_type<tc>, window_params = [{transform_indices = @transform_0, window_bounds = array<i64: 128, 64>}, {pipeline_mode = #tpu.pipeline_mode<synchronous>, transform_indices = @transform_1, window_bounds = array<i64: 1184, 64>}, {pipeline_mode = #tpu.pipeline_mode<synchronous>, transform_indices = @transform_2, window_bounds = array<i64: 80, 1>}, {transform_indices = @transform_3, window_bounds = array<i64: 128, 80>}]} {
    %c0 = arith.constant 0 : index
    %c0_0 = arith.constant 0 : index
    %0 = vector.load %arg1[%c0, %c0_0] : memref<128x64xf32, #tpu.memory_space<vmem>>, vector<128x64xf32>
    %1 = tpu.transpose %0, [1, 0] : vector<128x64xf32> -> vector<64x128xf32>
    %2 = arith.truncf %1 : vector<64x128xf32> to vector<64x128xbf16>
    %c0_1 = arith.constant 0 : index
    %c0_2 = arith.constant 0 : index
    %3 = vector.load %arg2[%c0_1, %c0_2] : memref<1184x64xbf16, #tpu.memory_space<vmem>>, vector<128x64xbf16>
    %cst = arith.constant dense<0.000000e+00> : vector<128x128xf32>
    %4 = tpu.matmul %3, %2, %cst {dimension_numbers = #tpu.dot_dimension_numbers<[1], [0], [0], [1], [0, 0, 1, 1], [], []>} : vector<128x64xbf16>, vector<64x128xbf16>, vector<128x128xf32> -> vector<128x128xf32>
    %5 = vector.extract_strided_slice %4 {offsets = [0, 0], sizes = [16, 128], strides = [1, 1]} : vector<128x128xf32> to vector<16x128xf32>
    %6 = vector.extract_strided_slice %4 {offsets = [16, 0], sizes = [16, 128], strides = [1, 1]} : vector<128x128xf32> to vector<16x128xf32>
    %7 = arith.maximumf %5, %6 : vector<16x128xf32>
    %8 = vector.extract_strided_slice %4 {offsets = [32, 0], sizes = [16, 128], strides = [1, 1]} : vector<128x128xf32> to vector<16x128xf32>
    %9 = arith.maximumf %7, %8 : vector<16x128xf32>
    %10 = vector.extract_strided_slice %4 {offsets = [48, 0], sizes = [16, 128], strides = [1, 1]} : vector<128x128xf32> to vector<16x128xf32>
    %11 = arith.maximumf %9, %10 : vector<16x128xf32>
    %12 = vector.extract_strided_slice %4 {offsets = [64, 0], sizes = [16, 128], strides = [1, 1]} : vector<128x128xf32> to vector<16x128xf32>
    %13 = arith.maximumf %11, %12 : vector<16x128xf32>
    %14 = vector.extract_strided_slice %4 {offsets = [80, 0], sizes = [16, 128], strides = [1, 1]} : vector<128x128xf32> to vector<16x128xf32>
    %15 = arith.maximumf %13, %14 : vector<16x128xf32>
    %16 = vector.extract_strided_slice %4 {offsets = [96, 0], sizes = [16, 128], strides = [1, 1]} : vector<128x128xf32> to vector<16x128xf32>
    %17 = arith.maximumf %15, %16 : vector<16x128xf32>
    %18 = vector.extract_strided_slice %4 {offsets = [112, 0], sizes = [16, 128], strides = [1, 1]} : vector<128x128xf32> to vector<16x128xf32>
    %19 = arith.maximumf %17, %18 : vector<16x128xf32>
    %c128 = arith.constant 128 : index
    %c0_3 = arith.constant 0 : index
    %20 = vector.load %arg2[%c128, %c0_3] : memref<1184x64xbf16, #tpu.memory_space<vmem>>, vector<128x64xbf16>
    %cst_4 = arith.constant dense<0.000000e+00> : vector<128x128xf32>
    %21 = tpu.matmul %20, %2, %cst_4 {dimension_numbers = #tpu.dot_dimension_numbers<[1], [0], [0], [1], [0, 0, 1, 1], [], []>} : vector<128x64xbf16>, vector<64x128xbf16>, vector<128x128xf32> -> vector<128x128xf32>
    %22 = vector.extract_strided_slice %21 {offsets = [0, 0], sizes = [16, 128], strides = [1, 1]} : vector<128x128xf32> to vector<16x128xf32>
    %23 = arith.maximumf %19, %22 : vector<16x128xf32>
    %24 = vector.extract_strided_slice %21 {offsets = [16, 0], sizes = [16, 128], strides = [1, 1]} : vector<128x128xf32> to vector<16x128xf32>
    %25 = arith.maximumf %23, %24 : vector<16x128xf32>
    %26 = vector.extract_strided_slice %21 {offsets = [32, 0], sizes = [16, 128], strides = [1, 1]} : vector<128x128xf32> to vector<16x128xf32>
    %27 = arith.maximumf %25, %26 : vector<16x128xf32>
    %28 = vector.extract_strided_slice %21 {offsets = [48, 0], sizes = [16, 128], strides = [1, 1]} : vector<128x128xf32> to vector<16x128xf32>
    %29 = arith.maximumf %27, %28 : vector<16x128xf32>
    %30 = vector.extract_strided_slice %21 {offsets = [64, 0], sizes = [16, 128], strides = [1, 1]} : vector<128x128xf32> to vector<16x128xf32>
    %31 = arith.maximumf %29, %30 : vector<16x128xf32>
    %32 = vector.extract_strided_slice %21 {offsets = [80, 0], sizes = [16, 128], strides = [1, 1]} : vector<128x128xf32> to vector<16x128xf32>
    %33 = arith.maximumf %31, %32 : vector<16x128xf32>
    %34 = vector.extract_strided_slice %21 {offsets = [96, 0], sizes = [16, 128], strides = [1, 1]} : vector<128x128xf32> to vector<16x128xf32>
    %35 = arith.maximumf %33, %34 : vector<16x128xf32>
    %36 = vector.extract_strided_slice %21 {offsets = [112, 0], sizes = [16, 128], strides = [1, 1]} : vector<128x128xf32> to vector<16x128xf32>
    %37 = arith.maximumf %35, %36 : vector<16x128xf32>
    %c0_5 = arith.constant 0 : index
    %c0_6 = arith.constant 0 : index
    %38 = vector.load %arg3[%c0_5, %c0_6] : memref<80x1xf32, #tpu.memory_space<vmem>>, vector<16x1xf32>
    %39 = vector.broadcast %38 : vector<16x1xf32> to vector<16x128xf32>
    %40 = arith.addf %37, %39 : vector<16x128xf32>
    %41 = math.tanh %40 : vector<16x128xf32>
    %c256 = arith.constant 256 : index
    %c0_7 = arith.constant 0 : index
    %42 = vector.load %arg2[%c256, %c0_7] : memref<1184x64xbf16, #tpu.memory_space<vmem>>, vector<128x64xbf16>
    %cst_8 = arith.constant dense<0.000000e+00> : vector<128x128xf32>
    %43 = tpu.matmul %42, %2, %cst_8 {dimension_numbers = #tpu.dot_dimension_numbers<[1], [0], [0], [1], [0, 0, 1, 1], [], []>} : vector<128x64xbf16>, vector<64x128xbf16>, vector<128x128xf32> -> vector<128x128xf32>
    %44 = vector.extract_strided_slice %43 {offsets = [0, 0], sizes = [32, 128], strides = [1, 1]} : vector<128x128xf32> to vector<32x128xf32>
    %45 = vector.extract_strided_slice %43 {offsets = [32, 0], sizes = [32, 128], strides = [1, 1]} : vector<128x128xf32> to vector<32x128xf32>
    %46 = arith.maximumf %44, %45 : vector<32x128xf32>
    %47 = vector.extract_strided_slice %43 {offsets = [64, 0], sizes = [32, 128], strides = [1, 1]} : vector<128x128xf32> to vector<32x128xf32>
    %48 = arith.maximumf %46, %47 : vector<32x128xf32>
    %49 = vector.extract_strided_slice %43 {offsets = [96, 0], sizes = [32, 128], strides = [1, 1]} : vector<128x128xf32> to vector<32x128xf32>
    %50 = arith.maximumf %48, %49 : vector<32x128xf32>
    %c384 = arith.constant 384 : index
    %c0_9 = arith.constant 0 : index
    %51 = vector.load %arg2[%c384, %c0_9] : memref<1184x64xbf16, #tpu.memory_space<vmem>>, vector<128x64xbf16>
    %cst_10 = arith.constant dense<0.000000e+00> : vector<128x128xf32>
    %52 = tpu.matmul %51, %2, %cst_10 {dimension_numbers = #tpu.dot_dimension_numbers<[1], [0], [0], [1], [0, 0, 1, 1], [], []>} : vector<128x64xbf16>, vector<64x128xbf16>, vector<128x128xf32> -> vector<128x128xf32>
    %53 = vector.extract_strided_slice %52 {offsets = [0, 0], sizes = [32, 128], strides = [1, 1]} : vector<128x128xf32> to vector<32x128xf32>
    %54 = arith.maximumf %50, %53 : vector<32x128xf32>
    %55 = vector.extract_strided_slice %52 {offsets = [32, 0], sizes = [32, 128], strides = [1, 1]} : vector<128x128xf32> to vector<32x128xf32>
    %56 = arith.maximumf %54, %55 : vector<32x128xf32>
    %57 = vector.extract_strided_slice %52 {offsets = [64, 0], sizes = [32, 128], strides = [1, 1]} : vector<128x128xf32> to vector<32x128xf32>
    %58 = arith.maximumf %56, %57 : vector<32x128xf32>
    %59 = vector.extract_strided_slice %52 {offsets = [96, 0], sizes = [32, 128], strides = [1, 1]} : vector<128x128xf32> to vector<32x128xf32>
    %60 = arith.maximumf %58, %59 : vector<32x128xf32>
    %c512 = arith.constant 512 : index
    %c0_11 = arith.constant 0 : index
    %61 = vector.load %arg2[%c512, %c0_11] : memref<1184x64xbf16, #tpu.memory_space<vmem>>, vector<128x64xbf16>
    %cst_12 = arith.constant dense<0.000000e+00> : vector<128x128xf32>
    %62 = tpu.matmul %61, %2, %cst_12 {dimension_numbers = #tpu.dot_dimension_numbers<[1], [0], [0], [1], [0, 0, 1, 1], [], []>} : vector<128x64xbf16>, vector<64x128xbf16>, vector<128x128xf32> -> vector<128x128xf32>
    %63 = vector.extract_strided_slice %62 {offsets = [0, 0], sizes = [32, 128], strides = [1, 1]} : vector<128x128xf32> to vector<32x128xf32>
    %64 = arith.maximumf %60, %63 : vector<32x128xf32>
    %65 = vector.extract_strided_slice %62 {offsets = [32, 0], sizes = [32, 128], strides = [1, 1]} : vector<128x128xf32> to vector<32x128xf32>
    %66 = arith.maximumf %64, %65 : vector<32x128xf32>
    %67 = vector.extract_strided_slice %62 {offsets = [64, 0], sizes = [32, 128], strides = [1, 1]} : vector<128x128xf32> to vector<32x128xf32>
    %68 = arith.maximumf %66, %67 : vector<32x128xf32>
    %69 = vector.extract_strided_slice %62 {offsets = [96, 0], sizes = [32, 128], strides = [1, 1]} : vector<128x128xf32> to vector<32x128xf32>
    %70 = arith.maximumf %68, %69 : vector<32x128xf32>
    %c640 = arith.constant 640 : index
    %c0_13 = arith.constant 0 : index
    %71 = vector.load %arg2[%c640, %c0_13] : memref<1184x64xbf16, #tpu.memory_space<vmem>>, vector<96x64xbf16>
    %cst_14 = arith.constant dense<0.000000e+00> : vector<96x128xf32>
    %72 = tpu.matmul %71, %2, %cst_14 {dimension_numbers = #tpu.dot_dimension_numbers<[1], [0], [0], [1], [0, 0, 1, 1], [], []>} : vector<96x64xbf16>, vector<64x128xbf16>, vector<96x128xf32> -> vector<96x128xf32>
    %73 = vector.extract_strided_slice %72 {offsets = [0, 0], sizes = [32, 128], strides = [1, 1]} : vector<96x128xf32> to vector<32x128xf32>
    %74 = arith.maximumf %70, %73 : vector<32x128xf32>
    %75 = vector.extract_strided_slice %72 {offsets = [32, 0], sizes = [32, 128], strides = [1, 1]} : vector<96x128xf32> to vector<32x128xf32>
    %76 = arith.maximumf %74, %75 : vector<32x128xf32>
    %77 = vector.extract_strided_slice %72 {offsets = [64, 0], sizes = [32, 128], strides = [1, 1]} : vector<96x128xf32> to vector<32x128xf32>
    %78 = arith.maximumf %76, %77 : vector<32x128xf32>
    %c16 = arith.constant 16 : index
    %c0_15 = arith.constant 0 : index
    %79 = vector.load %arg3[%c16, %c0_15] : memref<80x1xf32, #tpu.memory_space<vmem>>, vector<32x1xf32>
    %80 = vector.broadcast %79 : vector<32x1xf32> to vector<32x128xf32>
    %81 = arith.addf %78, %80 : vector<32x128xf32>
    %82 = math.tanh %81 : vector<32x128xf32>
    %c736 = arith.constant 736 : index
    %c0_16 = arith.constant 0 : index
    %83 = vector.load %arg2[%c736, %c0_16] : memref<1184x64xbf16, #tpu.memory_space<vmem>>, vector<128x64xbf16>
    %cst_17 = arith.constant dense<0.000000e+00> : vector<128x128xf32>
    %84 = tpu.matmul %83, %2, %cst_17 {dimension_numbers = #tpu.dot_dimension_numbers<[1], [0], [0], [1], [0, 0, 1, 1], [], []>} : vector<128x64xbf16>, vector<64x128xbf16>, vector<128x128xf32> -> vector<128x128xf32>
    %85 = vector.extract_strided_slice %84 {offsets = [0, 0], sizes = [32, 128], strides = [1, 1]} : vector<128x128xf32> to vector<32x128xf32>
    %86 = vector.extract_strided_slice %84 {offsets = [32, 0], sizes = [32, 128], strides = [1, 1]} : vector<128x128xf32> to vector<32x128xf32>
    %87 = arith.maximumf %85, %86 : vector<32x128xf32>
    %88 = vector.extract_strided_slice %84 {offsets = [64, 0], sizes = [32, 128], strides = [1, 1]} : vector<128x128xf32> to vector<32x128xf32>
    %89 = arith.maximumf %87, %88 : vector<32x128xf32>
    %90 = vector.extract_strided_slice %84 {offsets = [96, 0], sizes = [32, 128], strides = [1, 1]} : vector<128x128xf32> to vector<32x128xf32>
    %91 = arith.maximumf %89, %90 : vector<32x128xf32>
    %c864 = arith.constant 864 : index
    %c0_18 = arith.constant 0 : index
    %92 = vector.load %arg2[%c864, %c0_18] : memref<1184x64xbf16, #tpu.memory_space<vmem>>, vector<128x64xbf16>
    %cst_19 = arith.constant dense<0.000000e+00> : vector<128x128xf32>
    %93 = tpu.matmul %92, %2, %cst_19 {dimension_numbers = #tpu.dot_dimension_numbers<[1], [0], [0], [1], [0, 0, 1, 1], [], []>} : vector<128x64xbf16>, vector<64x128xbf16>, vector<128x128xf32> -> vector<128x128xf32>
    %94 = vector.extract_strided_slice %93 {offsets = [0, 0], sizes = [32, 128], strides = [1, 1]} : vector<128x128xf32> to vector<32x128xf32>
    %95 = arith.maximumf %91, %94 : vector<32x128xf32>
    %96 = vector.extract_strided_slice %93 {offsets = [32, 0], sizes = [32, 128], strides = [1, 1]} : vector<128x128xf32> to vector<32x128xf32>
    %97 = arith.maximumf %95, %96 : vector<32x128xf32>
    %98 = vector.extract_strided_slice %93 {offsets = [64, 0], sizes = [32, 128], strides = [1, 1]} : vector<128x128xf32> to vector<32x128xf32>
    %99 = arith.maximumf %97, %98 : vector<32x128xf32>
    %100 = vector.extract_strided_slice %93 {offsets = [96, 0], sizes = [32, 128], strides = [1, 1]} : vector<128x128xf32> to vector<32x128xf32>
    %101 = arith.maximumf %99, %100 : vector<32x128xf32>
    %c992 = arith.constant 992 : index
    %c0_20 = arith.constant 0 : index
    %102 = vector.load %arg2[%c992, %c0_20] : memref<1184x64xbf16, #tpu.memory_space<vmem>>, vector<128x64xbf16>
    %cst_21 = arith.constant dense<0.000000e+00> : vector<128x128xf32>
    %103 = tpu.matmul %102, %2, %cst_21 {dimension_numbers = #tpu.dot_dimension_numbers<[1], [0], [0], [1], [0, 0, 1, 1], [], []>} : vector<128x64xbf16>, vector<64x128xbf16>, vector<128x128xf32> -> vector<128x128xf32>
    %104 = vector.extract_strided_slice %103 {offsets = [0, 0], sizes = [32, 128], strides = [1, 1]} : vector<128x128xf32> to vector<32x128xf32>
    %105 = arith.maximumf %101, %104 : vector<32x128xf32>
    %106 = vector.extract_strided_slice %103 {offsets = [32, 0], sizes = [32, 128], strides = [1, 1]} : vector<128x128xf32> to vector<32x128xf32>
    %107 = arith.maximumf %105, %106 : vector<32x128xf32>
    %108 = vector.extract_strided_slice %103 {offsets = [64, 0], sizes = [32, 128], strides = [1, 1]} : vector<128x128xf32> to vector<32x128xf32>
    %109 = arith.maximumf %107, %108 : vector<32x128xf32>
    %110 = vector.extract_strided_slice %103 {offsets = [96, 0], sizes = [32, 128], strides = [1, 1]} : vector<128x128xf32> to vector<32x128xf32>
    %111 = arith.maximumf %109, %110 : vector<32x128xf32>
    %c1120 = arith.constant 1120 : index
    %c0_22 = arith.constant 0 : index
    %112 = vector.load %arg2[%c1120, %c0_22] : memref<1184x64xbf16, #tpu.memory_space<vmem>>, vector<64x64xbf16>
    %cst_23 = arith.constant dense<0.000000e+00> : vector<64x128xf32>
    %113 = tpu.matmul %112, %2, %cst_23 {dimension_numbers = #tpu.dot_dimension_numbers<[1], [0], [0], [1], [0, 0, 1, 1], [], []>} : vector<64x64xbf16>, vector<64x128xbf16>, vector<64x128xf32> -> vector<64x128xf32>
    %114 = vector.extract_strided_slice %113 {offsets = [0, 0], sizes = [32, 128], strides = [1, 1]} : vector<64x128xf32> to vector<32x128xf32>
    %115 = arith.maximumf %111, %114 : vector<32x128xf32>
    %116 = vector.extract_strided_slice %113 {offsets = [32, 0], sizes = [32, 128], strides = [1, 1]} : vector<64x128xf32> to vector<32x128xf32>
    %117 = arith.maximumf %115, %116 : vector<32x128xf32>
    %c48 = arith.constant 48 : index
    %c0_24 = arith.constant 0 : index
    %118 = vector.load %arg3[%c48, %c0_24] : memref<80x1xf32, #tpu.memory_space<vmem>>, vector<32x1xf32>
    %119 = vector.broadcast %118 : vector<32x1xf32> to vector<32x128xf32>
    %120 = arith.addf %117, %119 : vector<32x128xf32>
    %121 = math.tanh %120 : vector<32x128xf32>
    %122 = tpu.concatenate %41, %82, %121 in 0 : vector<16x128xf32>, vector<32x128xf32>, vector<32x128xf32> -> vector<80x128xf32>
    %123 = tpu.transpose %122, [1, 0] : vector<80x128xf32> -> vector<128x80xf32>
    %124 = arith.truncf %123 : vector<128x80xf32> to vector<128x80xbf16>
    %c0_25 = arith.constant 0 : index
    %c0_26 = arith.constant 0 : index
    %125 = vector.load %arg4[%c0_25, %c0_26] : memref<128x80xbf16, #tpu.memory_space<vmem>>, vector<128x80xbf16>
    tpu.vector_store %arg4[%c0_25, %c0_26], %124 {strides = array<i32>} : memref<128x80xbf16, #tpu.memory_space<vmem>>, vector<128x80xbf16>,
    return
  }
  func.func @transform_0(%arg0: i32) -> (i32, i32) {
    %c0_i32 = arith.constant 0 : i32
    %c0_i32_0 = arith.constant 0 : i32
    return %arg0, %c0_i32 : i32, i32
  }
  func.func @transform_1(%arg0: i32) -> (i32, i32) {
    %c0_i32 = arith.constant 0 : i32
    %c0_i32_0 = arith.constant 0 : i32
    %c0_i32_1 = arith.constant 0 : i32
    return %c0_i32, %c0_i32_0 : i32, i32
  }
  func.func @transform_2(%arg0: i32) -> (i32, i32) {
    %c0_i32 = arith.constant 0 : i32
    %c0_i32_0 = arith.constant 0 : i32
    %c0_i32_1 = arith.constant 0 : i32
    return %c0_i32, %c0_i32_0 : i32, i32
  }
  func.func @transform_3(%arg0: i32) -> (i32, i32) {
    %c0_i32 = arith.constant 0 : i32
    %c0_i32_0 = arith.constant 0 : i32
    return %arg0, %c0_i32 : i32, i32
  }
}

</mosaic_0001>

<llo_original>
// kernel: charcnn_forward.1
$region0: #{charcnn_forward.1}
  #allocation0 [shape = 'u32[]', space=smem, size = 0x4, offset = 0x4, fixed_abs, tag = 'smem constant byte address 0x4 - core index']
  #allocation1 [shape = 'u32[72,128]{1,0:T(1,128)}', space=vmem, size = 0x9000, scoped, tag = 'internal scratch']
  %s0 = inlined_call_operand.vmem [shape: f32[512,64], index: 0, kind: input, shape index: {}]
  %s1 = inlined_call_operand.vmem [shape: bf16[1184,64], index: 1, kind: input, shape index: {}]
  %s2 = inlined_call_operand.vmem [shape: f32[80,1], index: 2, kind: input, shape index: {}]
  %s3 = inlined_call_operand.vmem [shape: bf16[512,80], index: 3, kind: output, shape index: {}]
  %s4 = sld [smem:[#allocation0]]
  $region45: #{charcnn_forward.1} parent=0
    _
  %s6 = ssub.s32 1, %s4
  %s7 = scalar_select 0, %s6, %s4
  loop: start=0, step=1, limit=6
  $region2: #{charcnn_forward.1} parent=0 // loop_pre_header
    _
  $region3: #{charcnn_forward.1} parent=0 // loop_header
    %s9 = sphi 0, %s13
    %p10 = scmp.ge.s32.totalorder %s9, 6
    %s19 = sphi 0, %s21
    %s22 = sphi 0, %s19
    %s23 = sphi 0, %s22
    %s39 = sphi 0, %s23
    %s43 = sphi 0, %s43
    %s45 = sphi 0, %s43
    %s46 = sphi 0, %s45
    %s60 = sphi 0, %s46
    %s64 = sphi 0, %s64
    %s66 = sphi 0, %s64
    %s67 = sphi 0, %s66
    %s81 = sphi 0, %s67
    %s87 = sphi 0, %s89
    %s90 = sphi 0, %s87
    %s91 = sphi 0, %s90
    %s107 = sphi 0, %s91
  $region4: #{charcnn_forward.1} parent=0 // loop_header_branch
    %12 = sbr.rel (%p10) target = $region8
  $region5: #{charcnn_forward.1} parent=0 // loop_body
    %s14 = ssub.s32 %s9, 1
    %s15 = ssub.s32 %s9, 2
    %s16 = sadd.s32 %s9, 1
    %s17 = ssub.s32 %s9, %s16
    %p18 = scmp.eq.s32.totalorder %s17, 0
    %s20 = sadd.s32 %s19, 1
    %s21 = scalar_select %p18, %s19, %s20
    %p24 = pneg %p18
    %p25 = scmp.eq.s32.totalorder %s9, 3
    %p26 = por %p24, %p25
    %p27 = scmp.ne.s32.totalorder %s19, %s22
    %p28 = scmp.eq.s32.totalorder %s9, 0
    %p29 = por %p27, %p28
    %p30 = scmp.ne.s32.totalorder %s19, %s22
    %p31 = scmp.eq.s32.totalorder %s14, 3
    %p32 = por %p30, %p31
    %p33 = scmp.ne.s32.totalorder %s22, %s23
    %p34 = scmp.eq.s32.totalorder %s14, 0
    %p35 = por %p33, %p34
    %p36 = scmp.ne.s32.totalorder %s22, %s23
    %p37 = scmp.eq.s32.totalorder %s15, 3
    %p38 = por %p36, %p37
    %p40 = scmp.ne.s32.totalorder %s23, %s39
    %p41 = scmp.eq.s32.totalorder %s15, 0
    %p42 = por %p40, %p41
    %s44 = sadd.s32 %s43, 1
    %p47 = scmp.eq.s32.totalorder %s9, 3
    %p48 = scmp.ne.s32.totalorder %s43, %s45
    %p49 = scmp.eq.s32.totalorder %s9, 0
    %p50 = por %p48, %p49
    %p51 = scmp.ne.s32.totalorder %s43, %s45
    %p52 = scmp.eq.s32.totalorder %s14, 3
    %p53 = por %p51, %p52
    %p54 = scmp.ne.s32.totalorder %s45, %s46
    %p55 = scmp.eq.s32.totalorder %s14, 0
    %p56 = por %p54, %p55
    %p57 = scmp.ne.s32.totalorder %s45, %s46
    %p58 = scmp.eq.s32.totalorder %s15, 3
    %p59 = por %p57, %p58
    %p61 = scmp.ne.s32.totalorder %s46, %s60
    %p62 = scmp.eq.s32.totalorder %s15, 0
    %p63 = por %p61, %p62
    %s65 = sadd.s32 %s64, 1
    %p68 = scmp.eq.s32.totalorder %s9, 3
    %p69 = scmp.ne.s32.totalorder %s64, %s66
    %p70 = scmp.eq.s32.totalorder %s9, 0
    %p71 = por %p69, %p70
    %p72 = scmp.ne.s32.totalorder %s64, %s66
    %p73 = scmp.eq.s32.totalorder %s14, 3
    %p74 = por %p72, %p73
    %p75 = scmp.ne.s32.totalorder %s66, %s67
    %p76 = scmp.eq.s32.totalorder %s14, 0
    %p77 = por %p75, %p76
    %p78 = scmp.ne.s32.totalorder %s66, %s67
    %p79 = scmp.eq.s32.totalorder %s15, 3
    %p80 = por %p78, %p79
    %p82 = scmp.ne.s32.totalorder %s67, %s81
    %p83 = scmp.eq.s32.totalorder %s15, 0
    %p84 = por %p82, %p83
    %s85 = ssub.s32 %s9, %s16
    %p86 = scmp.eq.s32.totalorder %s85, 0
    %s88 = sadd.s32 %s87, 1
    %s89 = scalar_select %p86, %s87, %s88
    %p92 = pneg %p86
    %p93 = scmp.eq.s32.totalorder %s9, 3
    %p94 = por %p92, %p93
    %p95 = scmp.ne.s32.totalorder %s87, %s90
    %p96 = scmp.eq.s32.totalorder %s9, 0
    %p97 = por %p95, %p96
    %p98 = scmp.ne.s32.totalorder %s87, %s90
    %p99 = scmp.eq.s32.totalorder %s14, 3
    %p100 = por %p98, %p99
    %p101 = scmp.ne.s32.totalorder %s90, %s91
    %p102 = scmp.eq.s32.totalorder %s14, 0
    %p103 = por %p101, %p102
    %p104 = scmp.ne.s32.totalorder %s90, %s91
    %p105 = scmp.eq.s32.totalorder %s15, 3
    %p106 = por %p104, %p105
    %p108 = scmp.ne.s32.totalorder %s91, %s107
    %p109 = scmp.eq.s32.totalorder %s15, 0
    %p110 = por %p108, %p109
    %p111 = scmp.le.s32.totalorder 1, %s9
    %p112 = scmp.lt.s32.totalorder %s9, 5
    %p113 = pnand %p111, %p112
    %p114 = pneg %p113
    // Predicated region
    $region9: #{charcnn_forward.1} parent=5 // pred_check
      _
    $region10: #{charcnn_forward.1} parent=5 // pred_check_branch
      %116 = sbr.rel (%p113) target = $region12
    $region11: #{charcnn_forward.1} parent=5 // pred_region
      %s117 = ssub.s32 %s9, 1
      // Predicated region
      $region13: #{charcnn_forward.1} parent=11 // pred_check
        %p118 = pneg %p56
      $region14: #{charcnn_forward.1} parent=11 // pred_check_branch
        %120 = sbr.rel (%p118) target = $region16
      $region15: #{charcnn_forward.1} parent=11 // pred_region
        _
      $region16: #{charcnn_forward.1} parent=11 // pred_fallthru
        _
      // Predicated region
      $region17: #{charcnn_forward.1} parent=11 // pred_check
        %p121 = pneg %p77
      $region18: #{charcnn_forward.1} parent=11 // pred_check_branch
        %123 = sbr.rel (%p121) target = $region20
      $region19: #{charcnn_forward.1} parent=11 // pred_region
        _
      $region20: #{charcnn_forward.1} parent=11 // pred_fallthru
        _
    $region12: #{charcnn_forward.1} parent=5 // pred_fallthru
      _
    %p124 = scmp.lt.s32.totalorder %s9, 4
    // Predicated region
    $region21: #{charcnn_forward.1} parent=5 // pred_check
      %p125 = pneg %p124
    $region22: #{charcnn_forward.1} parent=5 // pred_check_branch
      %127 = sbr.rel (%p125) target = $region24
    $region23: #{charcnn_forward.1} parent=5 // pred_region
      // Predicated region
      $region25: #{charcnn_forward.1} parent=23 // pred_check
        %p128 = pneg %p29
      $region26: #{charcnn_forward.1} parent=23 // pred_check_branch
        %130 = sbr.rel (%p128) target = $region28
      $region27: #{charcnn_forward.1} parent=23 // pred_region
        %s131 = smul.u32 16, %s9
        %p132 = scmp.lt.s32.totalorder %s131, 63
        %s133 = scalar_select %p132, %s131, 63
        %s134 = smul.addr %s133, 8
        %s135 = scalar_lea.vmem %s0, %s134
        %s136 = smul.u32 16, %s9
      $region28: #{charcnn_forward.1} parent=23 // pred_fallthru
        _
    $region24: #{charcnn_forward.1} parent=5 // pred_fallthru
      _
    %p137 = scmp.le.s32.totalorder 1, %s9
    %p138 = scmp.lt.s32.totalorder %s9, 5
    %p139 = pnand %p137, %p138
    %p140 = pneg %p139
    // Predicated region
    $region29: #{charcnn_forward.1} parent=5 // pred_check
      _
    $region30: #{charcnn_forward.1} parent=5 // pred_check_branch
      %142 = sbr.rel (%p139) target = $region32
    $region31: #{charcnn_forward.1} parent=5 // pred_region
      %s143 = ssub.s32 %s9, 1
      %s144 = smul.u32 16, %s14
      %p145 = scmp.lt.s32.totalorder %s144, 63
      %s146 = scalar_select %p145, %s144, 63
      %s147 = smul.addr %s146, 8
      %s148 = scalar_lea.vmem %s0, %s147
      %p149 = pneg %p35
      %p150 = pneg %p32
      %p151 = pneg %p56
      %p152 = pneg %p53
      %p153 = pneg %p77
      %p154 = pneg %p74
      %p155 = pneg %p103
      %p156 = pneg %p100
      %s157 = smul.u32 16, %s14
      %p158 = scmp.lt.s32.totalorder %s157, 63
      %s159 = scalar_select %p158, %s157, 63
      %s160 = smul.addr %s159, 4
      %s161 = scalar_lea.vmem %s3, %s160
      %s162 = smul.u32 16, %s14
      %p163 = scmp.lt.s32.totalorder %s162, 63
      %s164 = scalar_select %p163, %s162, 63
      %s165 = smul.addr %s164, 8
      %s166 = scalar_lea.vmem %s0, %s165
      %s167 = smul.u32 16, %s14
      %s168 = smul.u32 16, %s14
      %p169 = scmp.lt.s32.totalorder %s168, 63
      %s170 = scalar_select %p169, %s168, 63
      %s171 = smul.addr %s170, 4
      %s172 = scalar_lea.vmem %s3, %s171
      %s173 = smul.u32 16, %s14
      %v175 = vld [vmem:[%s166] sm:$0xff]
      %v176 = vld [vmem:[%s166 + $0x8] sm:$0xff]
      %v177 = vld [vmem:[%s166 + $0x10] sm:$0xff]
      %v178 = vld [vmem:[%s166 + $0x18] sm:$0xff]
      %v179 = vld [vmem:[%s166 + $0x20] sm:$0xff]
      %v180 = vld [vmem:[%s166 + $0x28] sm:$0xff]
      %v181 = vld [vmem:[%s166 + $0x30] sm:$0xff]
      %v182 = vld [vmem:[%s166 + $0x38] sm:$0xff]
      %v183 = vld [vmem:[%s166 + $0x40] sm:$0xff]
      %v184 = vld [vmem:[%s166 + $0x48] sm:$0xff]
      %v185 = vld [vmem:[%s166 + $0x50] sm:$0xff]
      %v186 = vld [vmem:[%s166 + $0x58] sm:$0xff]
      %v187 = vld [vmem:[%s166 + $0x60] sm:$0xff]
      %v188 = vld [vmem:[%s166 + $0x68] sm:$0xff]
      %v189 = vld [vmem:[%s166 + $0x70] sm:$0xff]
      %v190 = vld [vmem:[%s166 + $0x78] sm:$0xff]
      %191 = vxpose.xlu0.b32.start [1/16] %v175, 128
      %192 = vxpose.xlu0.b32.cont [2/16] %v176, 128
      %193 = vxpose.xlu0.b32.cont [3/16] %v177, 128
      %194 = vxpose.xlu0.b32.cont [4/16] %v178, 128
      %195 = vxpose.xlu0.b32.cont [5/16] %v179, 128
      %196 = vxpose.xlu0.b32.cont [6/16] %v180, 128
      %197 = vxpose.xlu0.b32.cont [7/16] %v181, 128
      %198 = vxpose.xlu0.b32.cont [8/16] %v182, 128
      %199 = vxpose.xlu0.b32.cont [9/16] %v183, 128
      %200 = vxpose.xlu0.b32.cont [10/16] %v184, 128
      %201 = vxpose.xlu0.b32.cont [11/16] %v185, 128
      %202 = vxpose.xlu0.b32.cont [12/16] %v186, 128
      %203 = vxpose.xlu0.b32.cont [13/16] %v187, 128
      %204 = vxpose.xlu0.b32.cont [14/16] %v188, 128
      %205 = vxpose.xlu0.b32.cont [15/16] %v189, 128
      %206 = vxpose.xlu0.b32.end [16/16] %v190, 128
      %v207 = vpop.trf.xlu0
      %v208 = vpop.trf.xlu0
      %v209 = vpop.trf.xlu0
      %v210 = vpop.trf.xlu0
      %v211 = vpop.trf.xlu0
      %v212 = vpop.trf.xlu0
      %v213 = vpop.trf.xlu0
      %v214 = vpop.trf.xlu0
      %v215 = vpop.trf.xlu0
      %v216 = vpop.trf.xlu0
      %v217 = vpop.trf.xlu0
      %v218 = vpop.trf.xlu0
      %v219 = vpop.trf.xlu0
      %v220 = vpop.trf.xlu0
      %v221 = vpop.trf.xlu0
      %v222 = vpop.trf.xlu0
      %v223 = vpack.c.bf16 %v208, %v207
      %v224 = vpack.c.bf16 %v210, %v209
      %v225 = vpack.c.bf16 %v212, %v211
      %v226 = vpack.c.bf16 %v214, %v213
      %v227 = vld [vmem:[%s1] sm:$0xf]
      %v228 = vld [vmem:[%s1 + $0x4] sm:$0xf]
      %v229 = vld [vmem:[%s1 + $0x8] sm:$0xf]
      %v230 = vld [vmem:[%s1 + $0xc] sm:$0xf]
      %v231 = vld [vmem:[%s1 + $0x10] sm:$0xf]
      %v232 = vld [vmem:[%s1 + $0x14] sm:$0xf]
      %v233 = vld [vmem:[%s1 + $0x18] sm:$0xf]
      %v234 = vld [vmem:[%s1 + $0x1c] sm:$0xf]
      %v235 = vld [vmem:[%s1 + $0x20] sm:$0xf]
      %v236 = vld [vmem:[%s1 + $0x24] sm:$0xf]
      %v237 = vld [vmem:[%s1 + $0x28] sm:$0xf]
      %v238 = vld [vmem:[%s1 + $0x2c] sm:$0xf]
      %v239 = vld [vmem:[%s1 + $0x30] sm:$0xf]
      %v240 = vld [vmem:[%s1 + $0x34] sm:$0xf]
      %v241 = vld [vmem:[%s1 + $0x38] sm:$0xf]
      %v242 = vld [vmem:[%s1 + $0x3c] sm:$0xf]
      %v259 = vunpack.c.l.b16 %v227
      %v260 = vunpack.c.l.b16 %v228
      %v261 = vunpack.c.l.b16 %v229
      %v262 = vunpack.c.l.b16 %v230
      %v263 = vunpack.c.l.b16 %v231
      %v264 = vunpack.c.l.b16 %v232
      %v265 = vunpack.c.l.b16 %v233
      %v266 = vunpack.c.l.b16 %v234
      %v267 = vunpack.c.l.b16 %v235
      %v268 = vunpack.c.l.b16 %v236
      %v269 = vunpack.c.l.b16 %v237
      %v270 = vunpack.c.l.b16 %v238
      %v271 = vunpack.c.l.b16 %v239
      %v272 = vunpack.c.l.b16 %v240
      %v273 = vunpack.c.l.b16 %v241
      %v274 = vunpack.c.l.b16 %v242
      %v275 = vpack.c.b16 %v260, %v259
      %v276 = vpack.c.b16 %v262, %v261
      %v277 = vpack.c.b16 %v264, %v263
      %v278 = vpack.c.b16 %v266, %v265
      %v279 = vpack.c.b16 %v268, %v267
      %v280 = vpack.c.b16 %v270, %v269
      %v281 = vpack.c.b16 %v272, %v271
      %v282 = vpack.c.b16 %v274, %v273
      %vm283 = vcmask 523264
      %v285 = vsel %vm283, %v275, 0
      %v288 = vsel %vm283, %v276, 0
      %v291 = vsel %vm283, %v277, 0
      %v294 = vsel %vm283, %v278, 0
      %v297 = vsel %vm283, %v279, 0
      %v300 = vsel %vm283, %v280, 0
      %v303 = vsel %vm283, %v281, 0
      %v306 = vsel %vm283, %v282, 0
      %308 = vmatpush.bf16.msra.mxu0 0
      %309 = vmatpush.bf16.msra.mxu0 0
      %310 = vmatpush.bf16.msra.mxu0 0
      %311 = vmatpush.bf16.msra.mxu0 0
      %312 = vmatpush.bf16.msra.mxu0 %v226
      %313 = vmatpush.bf16.msra.mxu0 %v225
      %314 = vmatpush.bf16.msra.mxu0 %v224
      %315 = vmatpush.bf16.msra.mxu0 %v223
      %316 = vmatmul.bf16.gmra.mxu0 %v285
      %v317 = vpop.f32.mrf.mxu0
      %v318 = vadd.f32 0.0, %v317
      %v319 = vpop.f32.mrf.mxu0
      %v320 = vadd.f32 0.0, %v319
      %321 = vmatmul.bf16.gmra.mxu0 %v288
      %v322 = vpop.f32.mrf.mxu0
      %v323 = vadd.f32 0.0, %v322
      %v324 = vpop.f32.mrf.mxu0
      %v325 = vadd.f32 0.0, %v324
      %326 = vmatmul.bf16.gmra.mxu0 %v291
      %v327 = vpop.f32.mrf.mxu0
      %v328 = vadd.f32 0.0, %v327
      %v329 = vpop.f32.mrf.mxu0
      %v330 = vadd.f32 0.0, %v329
      %331 = vmatmul.bf16.gmra.mxu0 %v294
      %v332 = vpop.f32.mrf.mxu0
      %v333 = vadd.f32 0.0, %v332
      %v334 = vpop.f32.mrf.mxu0
      %v335 = vadd.f32 0.0, %v334
      %336 = vmatmul.bf16.gmra.mxu0 %v297
      %v337 = vpop.f32.mrf.mxu0
      %v338 = vadd.f32 0.0, %v337
      %v339 = vpop.f32.mrf.mxu0
      %v340 = vadd.f32 0.0, %v339
      %341 = vmatmul.bf16.gmra.mxu0 %v300
      %v342 = vpop.f32.mrf.mxu0
      %v343 = vadd.f32 0.0, %v342
      %v344 = vpop.f32.mrf.mxu0
      %v345 = vadd.f32 0.0, %v344
      %346 = vmatmul.bf16.gmra.mxu0 %v303
      %v347 = vpop.f32.mrf.mxu0
      %v348 = vadd.f32 0.0, %v347
      %v349 = vpop.f32.mrf.mxu0
      %v350 = vadd.f32 0.0, %v349
      %351 = vmatmul.bf16.gmra.mxu0 %v306
      %v352 = vpop.f32.mrf.mxu0
      %v353 = vadd.f32 0.0, %v352
      %v354 = vpop.f32.mrf.mxu0
      %v355 = vadd.f32 0.0, %v354
      %356 = vdwg.mxu0
      %v357 = vmax.f32 %v318, %v323
      %v358 = vmax.f32 %v320, %v325
      %v359 = vmax.f32 %v357, %v328
      %v360 = vmax.f32 %v358, %v330
      %v361 = vmax.f32 %v359, %v333
      %v362 = vmax.f32 %v360, %v335
      %v363 = vmax.f32 %v361, %v338
      %v364 = vmax.f32 %v362, %v340
      %v365 = vmax.f32 %v363, %v343
      %v366 = vmax.f32 %v364, %v345
      %v367 = vmax.f32 %v365, %v348
      %v368 = vmax.f32 %v366, %v350
      %v369 = vmax.f32 %v367, %v353
      %v370 = vmax.f32 %v368, %v355
      %v371 = vld [vmem:[%s1 + $0x40] sm:$0xf]
      %v372 = vld [vmem:[%s1 + $0x44] sm:$0xf]
      %v373 = vld [vmem:[%s1 + $0x48] sm:$0xf]
      %v374 = vld [vmem:[%s1 + $0x4c] sm:$0xf]
      %v375 = vld [vmem:[%s1 + $0x50] sm:$0xf]
      %v376 = vld [vmem:[%s1 + $0x54] sm:$0xf]
      %v377 = vld [vmem:[%s1 + $0x58] sm:$0xf]
      %v378 = vld [vmem:[%s1 + $0x5c] sm:$0xf]
      %v379 = vld [vmem:[%s1 + $0x60] sm:$0xf]
      %v380 = vld [vmem:[%s1 + $0x64] sm:$0xf]
      %v381 = vld [vmem:[%s1 + $0x68] sm:$0xf]
      %v382 = vld [vmem:[%s1 + $0x6c] sm:$0xf]
      %v383 = vld [vmem:[%s1 + $0x70] sm:$0xf]
      %v384 = vld [vmem:[%s1 + $0x74] sm:$0xf]
      %v385 = vld [vmem:[%s1 + $0x78] sm:$0xf]
      %v386 = vld [vmem:[%s1 + $0x7c] sm:$0xf]
      %v403 = vunpack.c.l.b16 %v371
      %v404 = vunpack.c.l.b16 %v372
      %v405 = vunpack.c.l.b16 %v373
      %v406 = vunpack.c.l.b16 %v374
      %v407 = vunpack.c.l.b16 %v375
      %v408 = vunpack.c.l.b16 %v376
      %v409 = vunpack.c.l.b16 %v377
      %v410 = vunpack.c.l.b16 %v378
      %v411 = vunpack.c.l.b16 %v379
      %v412 = vunpack.c.l.b16 %v380
      %v413 = vunpack.c.l.b16 %v381
      %v414 = vunpack.c.l.b16 %v382
      %v415 = vunpack.c.l.b16 %v383
      %v416 = vunpack.c.l.b16 %v384
      %v417 = vunpack.c.l.b16 %v385
      %v418 = vunpack.c.l.b16 %v386
      %v419 = vpack.c.b16 %v404, %v403
      %v420 = vpack.c.b16 %v406, %v405
      %v421 = vpack.c.b16 %v408, %v407
      %v422 = vpack.c.b16 %v410, %v409
      %v423 = vpack.c.b16 %v412, %v411
      %v424 = vpack.c.b16 %v414, %v413
      %v425 = vpack.c.b16 %v416, %v415
      %v426 = vpack.c.b16 %v418, %v417
      %v428 = vsel %vm283, %v419, 0
      %v431 = vsel %vm283, %v420, 0
      %v434 = vsel %vm283, %v421, 0
      %v437 = vsel %vm283, %v422, 0
      %v440 = vsel %vm283, %v423, 0
      %v443 = vsel %vm283, %v424, 0
      %v446 = vsel %vm283, %v425, 0
      %v449 = vsel %vm283, %v426, 0
      %451 = vmatpush.bf16.msra.mxu0 0
      %452 = vmatpush.bf16.msra.mxu0 0
      %453 = vmatpush.bf16.msra.mxu0 0
      %454 = vmatpush.bf16.msra.mxu0 0
      %455 = vmatpush.bf16.msra.mxu0 %v226
      %456 = vmatpush.bf16.msra.mxu0 %v225
      %457 = vmatpush.bf16.msra.mxu0 %v224
      %458 = vmatpush.bf16.msra.mxu0 %v223
      %459 = vmatmul.bf16.gmra.mxu0 %v428
      %v460 = vpop.f32.mrf.mxu0
      %v461 = vadd.f32 0.0, %v460
      %v462 = vpop.f32.mrf.mxu0
      %v463 = vadd.f32 0.0, %v462
      %464 = vmatmul.bf16.gmra.mxu0 %v431
      %v465 = vpop.f32.mrf.mxu0
      %v466 = vadd.f32 0.0, %v465
      %v467 = vpop.f32.mrf.mxu0
      %v468 = vadd.f32 0.0, %v467
      %469 = vmatmul.bf16.gmra.mxu0 %v434
      %v470 = vpop.f32.mrf.mxu0
      %v471 = vadd.f32 0.0, %v470
      %v472 = vpop.f32.mrf.mxu0
      %v473 = vadd.f32 0.0, %v472
      %474 = vmatmul.bf16.gmra.mxu0 %v437
      %v475 = vpop.f32.mrf.mxu0
      %v476 = vadd.f32 0.0, %v475
      %v477 = vpop.f32.mrf.mxu0
      %v478 = vadd.f32 0.0, %v477
      %479 = vmatmul.bf16.gmra.mxu0 %v440
      %v480 = vpop.f32.mrf.mxu0
      %v481 = vadd.f32 0.0, %v480
      %v482 = vpop.f32.mrf.mxu0
      %v483 = vadd.f32 0.0, %v482
      %484 = vmatmul.bf16.gmra.mxu0 %v443
      %v485 = vpop.f32.mrf.mxu0
      %v486 = vadd.f32 0.0, %v485
      %v487 = vpop.f32.mrf.mxu0
      %v488 = vadd.f32 0.0, %v487
      %489 = vmatmul.bf16.gmra.mxu0 %v446
      %v490 = vpop.f32.mrf.mxu0
      %v491 = vadd.f32 0.0, %v490
      %v492 = vpop.f32.mrf.mxu0
      %v493 = vadd.f32 0.0, %v492
      %494 = vmatmul.bf16.gmra.mxu0 %v449
      %v495 = vpop.f32.mrf.mxu0
      %v496 = vadd.f32 0.0, %v495
      %v497 = vpop.f32.mrf.mxu0
      %v498 = vadd.f32 0.0, %v497
      %499 = vdwg.mxu0
      %v500 = vmax.f32 %v369, %v461
      %v501 = vmax.f32 %v370, %v463
      %v502 = vmax.f32 %v500, %v466
      %v503 = vmax.f32 %v501, %v468
      %v504 = vmax.f32 %v502, %v471
      %v505 = vmax.f32 %v503, %v473
      %v506 = vmax.f32 %v504, %v476
      %v507 = vmax.f32 %v505, %v478
      %v508 = vmax.f32 %v506, %v481
      %v509 = vmax.f32 %v507, %v483
      %v510 = vmax.f32 %v508, %v486
      %v511 = vmax.f32 %v509, %v488
      %v512 = vmax.f32 %v510, %v491
      %v513 = vmax.f32 %v511, %v493
      %v514 = vmax.f32 %v512, %v496
      %v515 = vmax.f32 %v513, %v498
      %v516 = vld [vmem:[%s2] sm:$0xff]
      %v517 = vld [vmem:[%s2 + $0x8] sm:$0xff]
      %519 = vset.pattern.permute.xlu0 0
      %520 = vperm.xlu0 %519, %v516
      %v521 = vpop.permute.xlu0 %520
      %524 = vset.pattern.permute.xlu0 0
      %525 = vperm.xlu0 %524, %v517
      %v526 = vpop.permute.xlu0 %525
      %v528 = vadd.f32 %v514, %v521
      %v529 = vadd.f32 %v515, %v526
      %v530 = vtanh.pop %v528
      %v531 = vtanh.pop %v529
      %v532 = vld [vmem:[%s1 + $0x80] sm:$0xf]
      %v533 = vld [vmem:[%s1 + $0x84] sm:$0xf]
      %v534 = vld [vmem:[%s1 + $0x88] sm:$0xf]
      %v535 = vld [vmem:[%s1 + $0x8c] sm:$0xf]
      %v536 = vld [vmem:[%s1 + $0x90] sm:$0xf]
      %v537 = vld [vmem:[%s1 + $0x94] sm:$0xf]
      %v538 = vld [vmem:[%s1 + $0x98] sm:$0xf]
      %v539 = vld [vmem:[%s1 + $0x9c] sm:$0xf]
      %v540 = vld [vmem:[%s1 + $0xa0] sm:$0xf]
      %v541 = vld [vmem:[%s1 + $0xa4] sm:$0xf]
      %v542 = vld [vmem:[%s1 + $0xa8] sm:$0xf]
      %v543 = vld [vmem:[%s1 + $0xac] sm:$0xf]
      %v544 = vld [vmem:[%s1 + $0xb0] sm:$0xf]
      %v545 = vld [vmem:[%s1 + $0xb4] sm:$0xf]
      %v546 = vld [vmem:[%s1 + $0xb8] sm:$0xf]
      %v547 = vld [vmem:[%s1 + $0xbc] sm:$0xf]
      %v564 = vunpack.c.l.b16 %v532
      %v565 = vunpack.c.l.b16 %v533
      %v566 = vunpack.c.l.b16 %v534
      %v567 = vunpack.c.l.b16 %v535
      %v568 = vunpack.c.l.b16 %v536
      %v569 = vunpack.c.l.b16 %v537
      %v570 = vunpack.c.l.b16 %v538
      %v571 = vunpack.c.l.b16 %v539
      %v572 = vunpack.c.l.b16 %v540
      %v573 = vunpack.c.l.b16 %v541
      %v574 = vunpack.c.l.b16 %v542
      %v575 = vunpack.c.l.b16 %v543
      %v576 = vunpack.c.l.b16 %v544
      %v577 = vunpack.c.l.b16 %v545
      %v578 = vunpack.c.l.b16 %v546
      %v579 = vunpack.c.l.b16 %v547
      %v580 = vpack.c.b16 %v565, %v564
      %v581 = vpack.c.b16 %v567, %v566
      %v582 = vpack.c.b16 %v569, %v568
      %v583 = vpack.c.b16 %v571, %v570
      %v584 = vpack.c.b16 %v573, %v572
      %v585 = vpack.c.b16 %v575, %v574
      %v586 = vpack.c.b16 %v577, %v576
      %v587 = vpack.c.b16 %v579, %v578
      %v589 = vsel %vm283, %v580, 0
      %v592 = vsel %vm283, %v581, 0
      %v595 = vsel %vm283, %v582, 0
      %v598 = vsel %vm283, %v583, 0
      %v601 = vsel %vm283, %v584, 0
      %v604 = vsel %vm283, %v585, 0
      %v607 = vsel %vm283, %v586, 0
      %v610 = vsel %vm283, %v587, 0
      %612 = vmatpush.bf16.msra.mxu0 0
      %613 = vmatpush.bf16.msra.mxu0 0
      %614 = vmatpush.bf16.msra.mxu0 0
      %615 = vmatpush.bf16.msra.mxu0 0
      %616 = vmatpush.bf16.msra.mxu0 %v226
      %617 = vmatpush.bf16.msra.mxu0 %v225
      %618 = vmatpush.bf16.msra.mxu0 %v224
      %619 = vmatpush.bf16.msra.mxu0 %v223
      %620 = vmatmul.bf16.gmra.mxu0 %v589
      %v621 = vpop.f32.mrf.mxu0
      %v622 = vadd.f32 0.0, %v621
      %v623 = vpop.f32.mrf.mxu0
      %v624 = vadd.f32 0.0, %v623
      %625 = vmatmul.bf16.gmra.mxu0 %v592
      %v626 = vpop.f32.mrf.mxu0
      %v627 = vadd.f32 0.0, %v626
      %v628 = vpop.f32.mrf.mxu0
      %v629 = vadd.f32 0.0, %v628
      %630 = vmatmul.bf16.gmra.mxu0 %v595
      %v631 = vpop.f32.mrf.mxu0
      %v632 = vadd.f32 0.0, %v631
      %v633 = vpop.f32.mrf.mxu0
      %v634 = vadd.f32 0.0, %v633
      %635 = vmatmul.bf16.gmra.mxu0 %v598
      %v636 = vpop.f32.mrf.mxu0
      %v637 = vadd.f32 0.0, %v636
      %v638 = vpop.f32.mrf.mxu0
      %v639 = vadd.f32 0.0, %v638
      %640 = vmatmul.bf16.gmra.mxu0 %v601
      %v641 = vpop.f32.mrf.mxu0
      %v642 = vadd.f32 0.0, %v641
      %v643 = vpop.f32.mrf.mxu0
      %v644 = vadd.f32 0.0, %v643
      %645 = vmatmul.bf16.gmra.mxu0 %v604
      %v646 = vpop.f32.mrf.mxu0
      %v647 = vadd.f32 0.0, %v646
      %v648 = vpop.f32.mrf.mxu0
      %v649 = vadd.f32 0.0, %v648
      %650 = vmatmul.bf16.gmra.mxu0 %v607
      %v651 = vpop.f32.mrf.mxu0
      %v652 = vadd.f32 0.0, %v651
      %v653 = vpop.f32.mrf.mxu0
      %v654 = vadd.f32 0.0, %v653
      %655 = vmatmul.bf16.gmra.mxu0 %v610
      %v656 = vpop.f32.mrf.mxu0
      %v657 = vadd.f32 0.0, %v656
      %v658 = vpop.f32.mrf.mxu0
      %v659 = vadd.f32 0.0, %v658
      %660 = vdwg.mxu0
      %v661 = vmax.f32 %v622, %v632
      %v662 = vmax.f32 %v624, %v634
      %v663 = vmax.f32 %v627, %v637
      %v664 = vmax.f32 %v629, %v639
      %v665 = vmax.f32 %v661, %v642
      %v666 = vmax.f32 %v662, %v644
      %v667 = vmax.f32 %v663, %v647
      %v668 = vmax.f32 %v664, %v649
      %v669 = vmax.f32 %v665, %v652
      %v670 = vmax.f32 %v666, %v654
      %v671 = vmax.f32 %v667, %v657
      %v672 = vmax.f32 %v668, %v659
      %v673 = vld [vmem:[%s1 + $0xc0] sm:$0xf]
      %v674 = vld [vmem:[%s1 + $0xc4] sm:$0xf]
      %v675 = vld [vmem:[%s1 + $0xc8] sm:$0xf]
      %v676 = vld [vmem:[%s1 + $0xcc] sm:$0xf]
      %v677 = vld [vmem:[%s1 + $0xd0] sm:$0xf]
      %v678 = vld [vmem:[%s1 + $0xd4] sm:$0xf]
      %v679 = vld [vmem:[%s1 + $0xd8] sm:$0xf]
      %v680 = vld [vmem:[%s1 + $0xdc] sm:$0xf]
      %v681 = vld [vmem:[%s1 + $0xe0] sm:$0xf]
      %v682 = vld [vmem:[%s1 + $0xe4] sm:$0xf]
      %v683 = vld [vmem:[%s1 + $0xe8] sm:$0xf]
      %v684 = vld [vmem:[%s1 + $0xec] sm:$0xf]
      %v685 = vld [vmem:[%s1 + $0xf0] sm:$0xf]
      %v686 = vld [vmem:[%s1 + $0xf4] sm:$0xf]
      %v687 = vld [vmem:[%s1 + $0xf8] sm:$0xf]
      %v688 = vld [vmem:[%s1 + $0xfc] sm:$0xf]
      %v705 = vunpack.c.l.b16 %v673
      %v706 = vunpack.c.l.b16 %v674
      %v707 = vunpack.c.l.b16 %v675
      %v708 = vunpack.c.l.b16 %v676
      %v709 = vunpack.c.l.b16 %v677
      %v710 = vunpack.c.l.b16 %v678
      %v711 = vunpack.c.l.b16 %v679
      %v712 = vunpack.c.l.b16 %v680
      %v713 = vunpack.c.l.b16 %v681
      %v714 = vunpack.c.l.b16 %v682
      %v715 = vunpack.c.l.b16 %v683
      %v716 = vunpack.c.l.b16 %v684
      %v717 = vunpack.c.l.b16 %v685
      %v718 = vunpack.c.l.b16 %v686
      %v719 = vunpack.c.l.b16 %v687
      %v720 = vunpack.c.l.b16 %v688
      %v721 = vpack.c.b16 %v706, %v705
      %v722 = vpack.c.b16 %v708, %v707
      %v723 = vpack.c.b16 %v710, %v709
      %v724 = vpack.c.b16 %v712, %v711
      %v725 = vpack.c.b16 %v714, %v713
      %v726 = vpack.c.b16 %v716, %v715
      %v727 = vpack.c.b16 %v718, %v717
      %v728 = vpack.c.b16 %v720, %v719
      %v730 = vsel %vm283, %v721, 0
      %v733 = vsel %vm283, %v722, 0
      %v736 = vsel %vm283, %v723, 0
      %v739 = vsel %vm283, %v724, 0
      %v742 = vsel %vm283, %v725, 0
      %v745 = vsel %vm283, %v726, 0
      %v748 = vsel %vm283, %v727, 0
      %v751 = vsel %vm283, %v728, 0
      %753 = vmatpush.bf16.msra.mxu0 0
      %754 = vmatpush.bf16.msra.mxu0 0
      %755 = vmatpush.bf16.msra.mxu0 0
      %756 = vmatpush.bf16.msra.mxu0 0
      %757 = vmatpush.bf16.msra.mxu0 %v226
      %758 = vmatpush.bf16.msra.mxu0 %v225
      %759 = vmatpush.bf16.msra.mxu0 %v224
      %760 = vmatpush.bf16.msra.mxu0 %v223
      %761 = vmatmul.bf16.gmra.mxu0 %v730
      %v762 = vpop.f32.mrf.mxu0
      %v763 = vadd.f32 0.0, %v762
      %v764 = vpop.f32.mrf.mxu0
      %v765 = vadd.f32 0.0, %v764
      %766 = vmatmul.bf16.gmra.mxu0 %v733
      %v767 = vpop.f32.mrf.mxu0
      %v768 = vadd.f32 0.0, %v767
      %v769 = vpop.f32.mrf.mxu0
      %v770 = vadd.f32 0.0, %v769
      %771 = vmatmul.bf16.gmra.mxu0 %v736
      %v772 = vpop.f32.mrf.mxu0
      %v773 = vadd.f32 0.0, %v772
      %v774 = vpop.f32.mrf.mxu0
      %v775 = vadd.f32 0.0, %v774
      %776 = vmatmul.bf16.gmra.mxu0 %v739
      %v777 = vpop.f32.mrf.mxu0
      %v778 = vadd.f32 0.0, %v777
      %v779 = vpop.f32.mrf.mxu0
      %v780 = vadd.f32 0.0, %v779
      %781 = vmatmul.bf16.gmra.mxu0 %v742
      %v782 = vpop.f32.mrf.mxu0
      %v783 = vadd.f32 0.0, %v782
      %v784 = vpop.f32.mrf.mxu0
      %v785 = vadd.f32 0.0, %v784
      %786 = vmatmul.bf16.gmra.mxu0 %v745
      %v787 = vpop.f32.mrf.mxu0
      %v788 = vadd.f32 0.0, %v787
      %v789 = vpop.f32.mrf.mxu0
      %v790 = vadd.f32 0.0, %v789
      %791 = vmatmul.bf16.gmra.mxu0 %v748
      %v792 = vpop.f32.mrf.mxu0
      %v793 = vadd.f32 0.0, %v792
      %v794 = vpop.f32.mrf.mxu0
      %v795 = vadd.f32 0.0, %v794
      %796 = vmatmul.bf16.gmra.mxu0 %v751
      %v797 = vpop.f32.mrf.mxu0
      %v798 = vadd.f32 0.0, %v797
      %v799 = vpop.f32.mrf.mxu0
      %v800 = vadd.f32 0.0, %v799
      %801 = vdwg.mxu0
      %v802 = vmax.f32 %v669, %v763
      %v803 = vmax.f32 %v670, %v765
      %v804 = vmax.f32 %v671, %v768
      %v805 = vmax.f32 %v672, %v770
      %v806 = vmax.f32 %v802, %v773
      %v807 = vmax.f32 %v803, %v775
      %v808 = vmax.f32 %v804, %v778
      %v809 = vmax.f32 %v805, %v780
      %v810 = vmax.f32 %v806, %v783
      %v811 = vmax.f32 %v807, %v785
      %v812 = vmax.f32 %v808, %v788
      %v813 = vmax.f32 %v809, %v790
      %v814 = vmax.f32 %v810, %v793
      %v815 = vmax.f32 %v811, %v795
      %v816 = vmax.f32 %v812, %v798
      %v817 = vmax.f32 %v813, %v800
      %v818 = vld [vmem:[%s1 + $0x100] sm:$0xf]
      %v819 = vld [vmem:[%s1 + $0x104] sm:$0xf]
      %v820 = vld [vmem:[%s1 + $0x108] sm:$0xf]
      %v821 = vld [vmem:[%s1 + $0x10c] sm:$0xf]
      %v822 = vld [vmem:[%s1 + $0x110] sm:$0xf]
      %v823 = vld [vmem:[%s1 + $0x114] sm:$0xf]
      %v824 = vld [vmem:[%s1 + $0x118] sm:$0xf]
      %v825 = vld [vmem:[%s1 + $0x11c] sm:$0xf]
      %v826 = vld [vmem:[%s1 + $0x120] sm:$0xf]
      %v827 = vld [vmem:[%s1 + $0x124] sm:$0xf]
      %v828 = vld [vmem:[%s1 + $0x128] sm:$0xf]
      %v829 = vld [vmem:[%s1 + $0x12c] sm:$0xf]
      %v830 = vld [vmem:[%s1 + $0x130] sm:$0xf]
      %v831 = vld [vmem:[%s1 + $0x134] sm:$0xf]
      %v832 = vld [vmem:[%s1 + $0x138] sm:$0xf]
      %v833 = vld [vmem:[%s1 + $0x13c] sm:$0xf]
      %v850 = vunpack.c.l.b16 %v818
      %v851 = vunpack.c.l.b16 %v819
      %v852 = vunpack.c.l.b16 %v820
      %v853 = vunpack.c.l.b16 %v821
      %v854 = vunpack.c.l.b16 %v822
      %v855 = vunpack.c.l.b16 %v823
      %v856 = vunpack.c.l.b16 %v824
      %v857 = vunpack.c.l.b16 %v825
      %v858 = vunpack.c.l.b16 %v826
      %v859 = vunpack.c.l.b16 %v827
      %v860 = vunpack.c.l.b16 %v828
      %v861 = vunpack.c.l.b16 %v829
      %v862 = vunpack.c.l.b16 %v830
      %v863 = vunpack.c.l.b16 %v831
      %v864 = vunpack.c.l.b16 %v832
      %v865 = vunpack.c.l.b16 %v833
      %v866 = vpack.c.b16 %v851, %v850
      %v867 = vpack.c.b16 %v853, %v852
      %v868 = vpack.c.b16 %v855, %v854
      %v869 = vpack.c.b16 %v857, %v856
      %v870 = vpack.c.b16 %v859, %v858
      %v871 = vpack.c.b16 %v861, %v860
      %v872 = vpack.c.b16 %v863, %v862
      %v873 = vpack.c.b16 %v865, %v864
      %v875 = vsel %vm283, %v866, 0
      %v878 = vsel %vm283, %v867, 0
      %v881 = vsel %vm283, %v868, 0
      %v884 = vsel %vm283, %v869, 0
      %v887 = vsel %vm283, %v870, 0
      %v890 = vsel %vm283, %v871, 0
      %v893 = vsel %vm283, %v872, 0
      %v896 = vsel %vm283, %v873, 0
      %898 = vmatpush.bf16.msra.mxu0 0
      %899 = vmatpush.bf16.msra.mxu0 0
      %900 = vmatpush.bf16.msra.mxu0 0
      %901 = vmatpush.bf16.msra.mxu0 0
      %902 = vmatpush.bf16.msra.mxu0 %v226
      %903 = vmatpush.bf16.msra.mxu0 %v225
      %904 = vmatpush.bf16.msra.mxu0 %v224
      %905 = vmatpush.bf16.msra.mxu0 %v223
      %906 = vmatmul.bf16.gmra.mxu0 %v875
      %v907 = vpop.f32.mrf.mxu0
      %v908 = vadd.f32 0.0, %v907
      %v909 = vpop.f32.mrf.mxu0
      %v910 = vadd.f32 0.0, %v909
      %911 = vmatmul.bf16.gmra.mxu0 %v878
      %v912 = vpop.f32.mrf.mxu0
      %v913 = vadd.f32 0.0, %v912
      %v914 = vpop.f32.mrf.mxu0
      %v915 = vadd.f32 0.0, %v914
      %916 = vmatmul.bf16.gmra.mxu0 %v881
      %v917 = vpop.f32.mrf.mxu0
      %v918 = vadd.f32 0.0, %v917
      %v919 = vpop.f32.mrf.mxu0
      %v920 = vadd.f32 0.0, %v919
      %921 = vmatmul.bf16.gmra.mxu0 %v884
      %v922 = vpop.f32.mrf.mxu0
      %v923 = vadd.f32 0.0, %v922
      %v924 = vpop.f32.mrf.mxu0
      %v925 = vadd.f32 0.0, %v924
      %926 = vmatmul.bf16.gmra.mxu0 %v887
      %v927 = vpop.f32.mrf.mxu0
      %v928 = vadd.f32 0.0, %v927
      %v929 = vpop.f32.mrf.mxu0
      %v930 = vadd.f32 0.0, %v929
      %931 = vmatmul.bf16.gmra.mxu0 %v890
      %v932 = vpop.f32.mrf.mxu0
      %v933 = vadd.f32 0.0, %v932
      %v934 = vpop.f32.mrf.mxu0
      %v935 = vadd.f32 0.0, %v934
      %936 = vmatmul.bf16.gmra.mxu0 %v893
      %v937 = vpop.f32.mrf.mxu0
      %v938 = vadd.f32 0.0, %v937
      %v939 = vpop.f32.mrf.mxu0
      %v940 = vadd.f32 0.0, %v939
      %941 = vmatmul.bf16.gmra.mxu0 %v896
      %v942 = vpop.f32.mrf.mxu0
      %v943 = vadd.f32 0.0, %v942
      %v944 = vpop.f32.mrf.mxu0
      %v945 = vadd.f32 0.0, %v944
      %946 = vdwg.mxu0
      %v947 = vmax.f32 %v814, %v908
      %v948 = vmax.f32 %v815, %v910
      %v949 = vmax.f32 %v816, %v913
      %v950 = vmax.f32 %v817, %v915
      %v951 = vmax.f32 %v947, %v918
      %v952 = vmax.f32 %v948, %v920
      %v953 = vmax.f32 %v949, %v923
      %v954 = vmax.f32 %v950, %v925
      %v955 = vmax.f32 %v951, %v928
      %v956 = vmax.f32 %v952, %v930
      %v957 = vmax.f32 %v953, %v933
      %v958 = vmax.f32 %v954, %v935
      %v959 = vmax.f32 %v955, %v938
      %v960 = vmax.f32 %v956, %v940
      %v961 = vmax.f32 %v957, %v943
      %v962 = vmax.f32 %v958, %v945
      %v963 = vld [vmem:[%s1 + $0x140] sm:$0xf]
      %v964 = vld [vmem:[%s1 + $0x144] sm:$0xf]
      %v965 = vld [vmem:[%s1 + $0x148] sm:$0xf]
      %v966 = vld [vmem:[%s1 + $0x14c] sm:$0xf]
      %v967 = vld [vmem:[%s1 + $0x150] sm:$0xf]
      %v968 = vld [vmem:[%s1 + $0x154] sm:$0xf]
      %v969 = vld [vmem:[%s1 + $0x158] sm:$0xf]
      %v970 = vld [vmem:[%s1 + $0x15c] sm:$0xf]
      %v971 = vld [vmem:[%s1 + $0x160] sm:$0xf]
      %v972 = vld [vmem:[%s1 + $0x164] sm:$0xf]
      %v973 = vld [vmem:[%s1 + $0x168] sm:$0xf]
      %v974 = vld [vmem:[%s1 + $0x16c] sm:$0xf]
      %v987 = vunpack.c.l.b16 %v963
      %v988 = vunpack.c.l.b16 %v964
      %v989 = vunpack.c.l.b16 %v965
      %v990 = vunpack.c.l.b16 %v966
      %v991 = vunpack.c.l.b16 %v967
      %v992 = vunpack.c.l.b16 %v968
      %v993 = vunpack.c.l.b16 %v969
      %v994 = vunpack.c.l.b16 %v970
      %v995 = vunpack.c.l.b16 %v971
      %v996 = vunpack.c.l.b16 %v972
      %v997 = vunpack.c.l.b16 %v973
      %v998 = vunpack.c.l.b16 %v974
      %v999 = vpack.c.b16 %v988, %v987
      %v1000 = vpack.c.b16 %v990, %v989
      %v1001 = vpack.c.b16 %v992, %v991
      %v1002 = vpack.c.b16 %v994, %v993
      %v1003 = vpack.c.b16 %v996, %v995
      %v1004 = vpack.c.b16 %v998, %v997
      %v1006 = vsel %vm283, %v999, 0
      %v1009 = vsel %vm283, %v1000, 0
      %v1012 = vsel %vm283, %v1001, 0
      %v1015 = vsel %vm283, %v1002, 0
      %v1018 = vsel %vm283, %v1003, 0
      %v1021 = vsel %vm283, %v1004, 0
      %1023 = vmatpush.bf16.msra.mxu0 0
      %1024 = vmatpush.bf16.msra.mxu0 0
      %1025 = vmatpush.bf16.msra.mxu0 0
      %1026 = vmatpush.bf16.msra.mxu0 0
      %1027 = vmatpush.bf16.msra.mxu0 %v226
      %1028 = vmatpush.bf16.msra.mxu0 %v225
      %1029 = vmatpush.bf16.msra.mxu0 %v224
      %1030 = vmatpush.bf16.msra.mxu0 %v223
      %1031 = vmatmul.bf16.gmra.mxu0 %v1006
      %v1032 = vpop.f32.mrf.mxu0
      %v1033 = vadd.f32 0.0, %v1032
      %v1034 = vpop.f32.mrf.mxu0
      %v1035 = vadd.f32 0.0, %v1034
      %1036 = vmatmul.bf16.gmra.mxu0 %v1009
      %v1037 = vpop.f32.mrf.mxu0
      %v1038 = vadd.f32 0.0, %v1037
      %v1039 = vpop.f32.mrf.mxu0
      %v1040 = vadd.f32 0.0, %v1039
      %1041 = vmatmul.bf16.gmra.mxu0 %v1012
      %v1042 = vpop.f32.mrf.mxu0
      %v1043 = vadd.f32 0.0, %v1042
      %v1044 = vpop.f32.mrf.mxu0
      %v1045 = vadd.f32 0.0, %v1044
      %1046 = vmatmul.bf16.gmra.mxu0 %v1015
      %v1047 = vpop.f32.mrf.mxu0
      %v1048 = vadd.f32 0.0, %v1047
      %v1049 = vpop.f32.mrf.mxu0
      %v1050 = vadd.f32 0.0, %v1049
      %1051 = vmatmul.bf16.gmra.mxu0 %v1018
      %v1052 = vpop.f32.mrf.mxu0
      %v1053 = vadd.f32 0.0, %v1052
      %v1054 = vpop.f32.mrf.mxu0
      %v1055 = vadd.f32 0.0, %v1054
      %1056 = vmatmul.bf16.gmra.mxu0 %v1021
      %v1057 = vpop.f32.mrf.mxu0
      %v1058 = vadd.f32 0.0, %v1057
      %v1059 = vpop.f32.mrf.mxu0
      %v1060 = vadd.f32 0.0, %v1059
      %1061 = vdwg.mxu0
      %v1062 = vmax.f32 %v959, %v1033
      %v1063 = vmax.f32 %v960, %v1035
      %v1064 = vmax.f32 %v961, %v1038
      %v1065 = vmax.f32 %v962, %v1040
      %v1066 = vmax.f32 %v1062, %v1043
      %v1067 = vmax.f32 %v1063, %v1045
      %v1068 = vmax.f32 %v1064, %v1048
      %v1069 = vmax.f32 %v1065, %v1050
      %v1070 = vmax.f32 %v1066, %v1053
      %v1071 = vmax.f32 %v1067, %v1055
      %v1072 = vmax.f32 %v1068, %v1058
      %v1073 = vmax.f32 %v1069, %v1060
      %v1074 = vld [vmem:[%s2 + $0x10] sm:$0xff]
      %v1075 = vld [vmem:[%s2 + $0x18] sm:$0xff]
      %v1076 = vld [vmem:[%s2 + $0x20] sm:$0xff]
      %v1077 = vld [vmem:[%s2 + $0x28] sm:$0xff]
      %1079 = vset.pattern.permute.xlu0 0
      %1080 = vperm.xlu0 %1079, %v1074
      %v1081 = vpop.permute.xlu0 %1080
      %1084 = vset.pattern.permute.xlu0 0
      %1085 = vperm.xlu0 %1084, %v1075
      %v1086 = vpop.permute.xlu0 %1085
      %1089 = vset.pattern.permute.xlu0 0
      %1090 = vperm.xlu0 %1089, %v1076
      %v1091 = vpop.permute.xlu0 %1090
      %1094 = vset.pattern.permute.xlu0 0
      %1095 = vperm.xlu0 %1094, %v1077
      %v1096 = vpop.permute.xlu0 %1095
      %v1098 = vadd.f32 %v1070, %v1081
      %v1099 = vadd.f32 %v1071, %v1086
      %v1100 = vadd.f32 %v1072, %v1091
      %v1101 = vadd.f32 %v1073, %v1096
      %v1102 = vtanh.pop %v1098
      %v1103 = vtanh.pop %v1099
      %v1104 = vtanh.pop %v1100
      %v1105 = vtanh.pop %v1101
      %v1106 = vld [vmem:[%s1 + $0x170] sm:$0xf]
      %v1107 = vld [vmem:[%s1 + $0x174] sm:$0xf]
      %v1108 = vld [vmem:[%s1 + $0x178] sm:$0xf]
      %v1109 = vld [vmem:[%s1 + $0x17c] sm:$0xf]
      %v1110 = vld [vmem:[%s1 + $0x180] sm:$0xf]
      %v1111 = vld [vmem:[%s1 + $0x184] sm:$0xf]
      %v1112 = vld [vmem:[%s1 + $0x188] sm:$0xf]
      %v1113 = vld [vmem:[%s1 + $0x18c] sm:$0xf]
      %v1114 = vld [vmem:[%s1 + $0x190] sm:$0xf]
      %v1115 = vld [vmem:[%s1 + $0x194] sm:$0xf]
      %v1116 = vld [vmem:[%s1 + $0x198] sm:$0xf]
      %v1117 = vld [vmem:[%s1 + $0x19c] sm:$0xf]
      %v1118 = vld [vmem:[%s1 + $0x1a0] sm:$0xf]
      %v1119 = vld [vmem:[%s1 + $0x1a4] sm:$0xf]
      %v1120 = vld [vmem:[%s1 + $0x1a8] sm:$0xf]
      %v1121 = vld [vmem:[%s1 + $0x1ac] sm:$0xf]
      %v1138 = vunpack.c.l.b16 %v1106
      %v1139 = vunpack.c.l.b16 %v1107
      %v1140 = vunpack.c.l.b16 %v1108
      %v1141 = vunpack.c.l.b16 %v1109
      %v1142 = vunpack.c.l.b16 %v1110
      %v1143 = vunpack.c.l.b16 %v1111
      %v1144 = vunpack.c.l.b16 %v1112
      %v1145 = vunpack.c.l.b16 %v1113
      %v1146 = vunpack.c.l.b16 %v1114
      %v1147 = vunpack.c.l.b16 %v1115
      %v1148 = vunpack.c.l.b16 %v1116
      %v1149 = vunpack.c.l.b16 %v1117
      %v1150 = vunpack.c.l.b16 %v1118
      %v1151 = vunpack.c.l.b16 %v1119
      %v1152 = vunpack.c.l.b16 %v1120
      %v1153 = vunpack.c.l.b16 %v1121
      %v1154 = vpack.c.b16 %v1139, %v1138
      %v1155 = vpack.c.b16 %v1141, %v1140
      %v1156 = vpack.c.b16 %v1143, %v1142
      %v1157 = vpack.c.b16 %v1145, %v1144
      %v1158 = vpack.c.b16 %v1147, %v1146
      %v1159 = vpack.c.b16 %v1149, %v1148
      %v1160 = vpack.c.b16 %v1151, %v1150
      %v1161 = vpack.c.b16 %v1153, %v1152
      %v1163 = vsel %vm283, %v1154, 0
      %v1166 = vsel %vm283, %v1155, 0
      %v1169 = vsel %vm283, %v1156, 0
      %v1172 = vsel %vm283, %v1157, 0
      %v1175 = vsel %vm283, %v1158, 0
      %v1178 = vsel %vm283, %v1159, 0
      %v1181 = vsel %vm283, %v1160, 0
      %v1184 = vsel %vm283, %v1161, 0
      %1186 = vmatpush.bf16.msra.mxu0 0
      %1187 = vmatpush.bf16.msra.mxu0 0
      %1188 = vmatpush.bf16.msra.mxu0 0
      %1189 = vmatpush.bf16.msra.mxu0 0
      %1190 = vmatpush.bf16.msra.mxu0 %v226
      %1191 = vmatpush.bf16.msra.mxu0 %v225
      %1192 = vmatpush.bf16.msra.mxu0 %v224
      %1193 = vmatpush.bf16.msra.mxu0 %v223
      %1194 = vmatmul.bf16.gmra.mxu0 %v1163
      %v1195 = vpop.f32.mrf.mxu0
      %v1196 = vadd.f32 0.0, %v1195
      %v1197 = vpop.f32.mrf.mxu0
      %v1198 = vadd.f32 0.0, %v1197
      %1199 = vmatmul.bf16.gmra.mxu0 %v1166
      %v1200 = vpop.f32.mrf.mxu0
      %v1201 = vadd.f32 0.0, %v1200
      %v1202 = vpop.f32.mrf.mxu0
      %v1203 = vadd.f32 0.0, %v1202
      %1204 = vmatmul.bf16.gmra.mxu0 %v1169
      %v1205 = vpop.f32.mrf.mxu0
      %v1206 = vadd.f32 0.0, %v1205
      %v1207 = vpop.f32.mrf.mxu0
      %v1208 = vadd.f32 0.0, %v1207
      %1209 = vmatmul.bf16.gmra.mxu0 %v1172
      %v1210 = vpop.f32.mrf.mxu0
      %v1211 = vadd.f32 0.0, %v1210
      %v1212 = vpop.f32.mrf.mxu0
      %v1213 = vadd.f32 0.0, %v1212
      %1214 = vmatmul.bf16.gmra.mxu0 %v1175
      %v1215 = vpop.f32.mrf.mxu0
      %v1216 = vadd.f32 0.0, %v1215
      %v1217 = vpop.f32.mrf.mxu0
      %v1218 = vadd.f32 0.0, %v1217
      %1219 = vmatmul.bf16.gmra.mxu0 %v1178
      %v1220 = vpop.f32.mrf.mxu0
      %v1221 = vadd.f32 0.0, %v1220
      %v1222 = vpop.f32.mrf.mxu0
      %v1223 = vadd.f32 0.0, %v1222
      %1224 = vmatmul.bf16.gmra.mxu0 %v1181
      %v1225 = vpop.f32.mrf.mxu0
      %v1226 = vadd.f32 0.0, %v1225
      %v1227 = vpop.f32.mrf.mxu0
      %v1228 = vadd.f32 0.0, %v1227
      %1229 = vmatmul.bf16.gmra.mxu0 %v1184
      %v1230 = vpop.f32.mrf.mxu0
      %v1231 = vadd.f32 0.0, %v1230
      %v1232 = vpop.f32.mrf.mxu0
      %v1233 = vadd.f32 0.0, %v1232
      %1234 = vdwg.mxu0
      %v1235 = vmax.f32 %v1196, %v1206
      %v1236 = vmax.f32 %v1198, %v1208
      %v1237 = vmax.f32 %v1201, %v1211
      %v1238 = vmax.f32 %v1203, %v1213
      %v1239 = vmax.f32 %v1235, %v1216
      %v1240 = vmax.f32 %v1236, %v1218
      %v1241 = vmax.f32 %v1237, %v1221
      %v1242 = vmax.f32 %v1238, %v1223
      %v1243 = vmax.f32 %v1239, %v1226
      %v1244 = vmax.f32 %v1240, %v1228
      %v1245 = vmax.f32 %v1241, %v1231
      %v1246 = vmax.f32 %v1242, %v1233
      %v1247 = vld [vmem:[%s1 + $0x1b0] sm:$0xf]
      %v1248 = vld [vmem:[%s1 + $0x1b4] sm:$0xf]
      %v1249 = vld [vmem:[%s1 + $0x1b8] sm:$0xf]
      %v1250 = vld [vmem:[%s1 + $0x1bc] sm:$0xf]
      %v1251 = vld [vmem:[%s1 + $0x1c0] sm:$0xf]
      %v1252 = vld [vmem:[%s1 + $0x1c4] sm:$0xf]
      %v1253 = vld [vmem:[%s1 + $0x1c8] sm:$0xf]
      %v1254 = vld [vmem:[%s1 + $0x1cc] sm:$0xf]
      %v1255 = vld [vmem:[%s1 + $0x1d0] sm:$0xf]
      %v1256 = vld [vmem:[%s1 + $0x1d4] sm:$0xf]
      %v1257 = vld [vmem:[%s1 + $0x1d8] sm:$0xf]
      %v1258 = vld [vmem:[%s1 + $0x1dc] sm:$0xf]
      %v1259 = vld [vmem:[%s1 + $0x1e0] sm:$0xf]
      %v1260 = vld [vmem:[%s1 + $0x1e4] sm:$0xf]
      %v1261 = vld [vmem:[%s1 + $0x1e8] sm:$0xf]
      %v1262 = vld [vmem:[%s1 + $0x1ec] sm:$0xf]
      %v1279 = vunpack.c.l.b16 %v1247
      %v1280 = vunpack.c.l.b16 %v1248
      %v1281 = vunpack.c.l.b16 %v1249
      %v1282 = vunpack.c.l.b16 %v1250
      %v1283 = vunpack.c.l.b16 %v1251
      %v1284 = vunpack.c.l.b16 %v1252
      %v1285 = vunpack.c.l.b16 %v1253
      %v1286 = vunpack.c.l.b16 %v1254
      %v1287 = vunpack.c.l.b16 %v1255
      %v1288 = vunpack.c.l.b16 %v1256
      %v1289 = vunpack.c.l.b16 %v1257
      %v1290 = vunpack.c.l.b16 %v1258
      %v1291 = vunpack.c.l.b16 %v1259
      %v1292 = vunpack.c.l.b16 %v1260
      %v1293 = vunpack.c.l.b16 %v1261
      %v1294 = vunpack.c.l.b16 %v1262
      %v1295 = vpack.c.b16 %v1280, %v1279
      %v1296 = vpack.c.b16 %v1282, %v1281
      %v1297 = vpack.c.b16 %v1284, %v1283
      %v1298 = vpack.c.b16 %v1286, %v1285
      %v1299 = vpack.c.b16 %v1288, %v1287
      %v1300 = vpack.c.b16 %v1290, %v1289
      %v1301 = vpack.c.b16 %v1292, %v1291
      %v1302 = vpack.c.b16 %v1294, %v1293
      %v1304 = vsel %vm283, %v1295, 0
      %v1307 = vsel %vm283, %v1296, 0
      %v1310 = vsel %vm283, %v1297, 0
      %v1313 = vsel %vm283, %v1298, 0
      %v1316 = vsel %vm283, %v1299, 0
      %v1319 = vsel %vm283, %v1300, 0
      %v1322 = vsel %vm283, %v1301, 0
      %v1325 = vsel %vm283, %v1302, 0
      %1327 = vmatpush.bf16.msra.mxu0 0
      %1328 = vmatpush.bf16.msra.mxu0 0
      %1329 = vmatpush.bf16.msra.mxu0 0
      %1330 = vmatpush.bf16.msra.mxu0 0
      %1331 = vmatpush.bf16.msra.mxu0 %v226
      %1332 = vmatpush.bf16.msra.mxu0 %v225
      %1333 = vmatpush.bf16.msra.mxu0 %v224
      %1334 = vmatpush.bf16.msra.mxu0 %v223
      %1335 = vmatmul.bf16.gmra.mxu0 %v1304
      %v1336 = vpop.f32.mrf.mxu0
      %v1337 = vadd.f32 0.0, %v1336
      %v1338 = vpop.f32.mrf.mxu0
      %v1339 = vadd.f32 0.0, %v1338
      %1340 = vmatmul.bf16.gmra.mxu0 %v1307
      %v1341 = vpop.f32.mrf.mxu0
      %v1342 = vadd.f32 0.0, %v1341
      %v1343 = vpop.f32.mrf.mxu0
      %v1344 = vadd.f32 0.0, %v1343
      %1345 = vmatmul.bf16.gmra.mxu0 %v1310
      %v1346 = vpop.f32.mrf.mxu0
      %v1347 = vadd.f32 0.0, %v1346
      %v1348 = vpop.f32.mrf.mxu0
      %v1349 = vadd.f32 0.0, %v1348
      %1350 = vmatmul.bf16.gmra.mxu0 %v1313
      %v1351 = vpop.f32.mrf.mxu0
      %v1352 = vadd.f32 0.0, %v1351
      %v1353 = vpop.f32.mrf.mxu0
      %v1354 = vadd.f32 0.0, %v1353
      %1355 = vmatmul.bf16.gmra.mxu0 %v1316
      %v1356 = vpop.f32.mrf.mxu0
      %v1357 = vadd.f32 0.0, %v1356
      %v1358 = vpop.f32.mrf.mxu0
      %v1359 = vadd.f32 0.0, %v1358
      %1360 = vmatmul.bf16.gmra.mxu0 %v1319
      %v1361 = vpop.f32.mrf.mxu0
      %v1362 = vadd.f32 0.0, %v1361
      %v1363 = vpop.f32.mrf.mxu0
      %v1364 = vadd.f32 0.0, %v1363
      %1365 = vmatmul.bf16.gmra.mxu0 %v1322
      %v1366 = vpop.f32.mrf.mxu0
      %v1367 = vadd.f32 0.0, %v1366
      %v1368 = vpop.f32.mrf.mxu0
      %v1369 = vadd.f32 0.0, %v1368
      %1370 = vmatmul.bf16.gmra.mxu0 %v1325
      %v1371 = vpop.f32.mrf.mxu0
      %v1372 = vadd.f32 0.0, %v1371
      %v1373 = vpop.f32.mrf.mxu0
      %v1374 = vadd.f32 0.0, %v1373
      %1375 = vdwg.mxu0
      %v1376 = vmax.f32 %v1243, %v1337
      %v1377 = vmax.f32 %v1244, %v1339
      %v1378 = vmax.f32 %v1245, %v1342
      %v1379 = vmax.f32 %v1246, %v1344
      %v1380 = vmax.f32 %v1376, %v1347
      %v1381 = vmax.f32 %v1377, %v1349
      %v1382 = vmax.f32 %v1378, %v1352
      %v1383 = vmax.f32 %v1379, %v1354
      %v1384 = vmax.f32 %v1380, %v1357
      %v1385 = vmax.f32 %v1381, %v1359
      %v1386 = vmax.f32 %v1382, %v1362
      %v1387 = vmax.f32 %v1383, %v1364
      %v1388 = vmax.f32 %v1384, %v1367
      %v1389 = vmax.f32 %v1385, %v1369
      %v1390 = vmax.f32 %v1386, %v1372
      %v1391 = vmax.f32 %v1387, %v1374
      %v1392 = vld [vmem:[%s1 + $0x1f0] sm:$0xf]
      %v1393 = vld [vmem:[%s1 + $0x1f4] sm:$0xf]
      %v1394 = vld [vmem:[%s1 + $0x1f8] sm:$0xf]
      %v1395 = vld [vmem:[%s1 + $0x1fc] sm:$0xf]
      %v1396 = vld [vmem:[%s1 + $0x200] sm:$0xf]
      %v1397 = vld [vmem:[%s1 + $0x204] sm:$0xf]
      %v1398 = vld [vmem:[%s1 + $0x208] sm:$0xf]
      %v1399 = vld [vmem:[%s1 + $0x20c] sm:$0xf]
      %v1400 = vld [vmem:[%s1 + $0x210] sm:$0xf]
      %v1401 = vld [vmem:[%s1 + $0x214] sm:$0xf]
      %v1402 = vld [vmem:[%s1 + $0x218] sm:$0xf]
      %v1403 = vld [vmem:[%s1 + $0x21c] sm:$0xf]
      %v1404 = vld [vmem:[%s1 + $0x220] sm:$0xf]
      %v1405 = vld [vmem:[%s1 + $0x224] sm:$0xf]
      %v1406 = vld [vmem:[%s1 + $0x228] sm:$0xf]
      %v1407 = vld [vmem:[%s1 + $0x22c] sm:$0xf]
      %v1424 = vunpack.c.l.b16 %v1392
      %v1425 = vunpack.c.l.b16 %v1393
      %v1426 = vunpack.c.l.b16 %v1394
      %v1427 = vunpack.c.l.b16 %v1395
      %v1428 = vunpack.c.l.b16 %v1396
      %v1429 = vunpack.c.l.b16 %v1397
      %v1430 = vunpack.c.l.b16 %v1398
      %v1431 = vunpack.c.l.b16 %v1399
      %v1432 = vunpack.c.l.b16 %v1400
      %v1433 = vunpack.c.l.b16 %v1401
      %v1434 = vunpack.c.l.b16 %v1402
      %v1435 = vunpack.c.l.b16 %v1403
      %v1436 = vunpack.c.l.b16 %v1404
      %v1437 = vunpack.c.l.b16 %v1405
      %v1438 = vunpack.c.l.b16 %v1406
      %v1439 = vunpack.c.l.b16 %v1407
      %v1440 = vpack.c.b16 %v1425, %v1424
      %v1441 = vpack.c.b16 %v1427, %v1426
      %v1442 = vpack.c.b16 %v1429, %v1428
      %v1443 = vpack.c.b16 %v1431, %v1430
      %v1444 = vpack.c.b16 %v1433, %v1432
      %v1445 = vpack.c.b16 %v1435, %v1434
      %v1446 = vpack.c.b16 %v1437, %v1436
      %v1447 = vpack.c.b16 %v1439, %v1438
      %v1449 = vsel %vm283, %v1440, 0
      %v1452 = vsel %vm283, %v1441, 0
      %v1455 = vsel %vm283, %v1442, 0
      %v1458 = vsel %vm283, %v1443, 0
      %v1461 = vsel %vm283, %v1444, 0
      %v1464 = vsel %vm283, %v1445, 0
      %v1467 = vsel %vm283, %v1446, 0
      %v1470 = vsel %vm283, %v1447, 0
      %1472 = vmatpush.bf16.msra.mxu0 0
      %1473 = vmatpush.bf16.msra.mxu0 0
      %1474 = vmatpush.bf16.msra.mxu0 0
      %1475 = vmatpush.bf16.msra.mxu0 0
      %1476 = vmatpush.bf16.msra.mxu0 %v226
      %1477 = vmatpush.bf16.msra.mxu0 %v225
      %1478 = vmatpush.bf16.msra.mxu0 %v224
      %1479 = vmatpush.bf16.msra.mxu0 %v223
      %1480 = vmatmul.bf16.gmra.mxu0 %v1449
      %v1481 = vpop.f32.mrf.mxu0
      %v1482 = vadd.f32 0.0, %v1481
      %v1483 = vpop.f32.mrf.mxu0
      %v1484 = vadd.f32 0.0, %v1483
      %1485 = vmatmul.bf16.gmra.mxu0 %v1452
      %v1486 = vpop.f32.mrf.mxu0
      %v1487 = vadd.f32 0.0, %v1486
      %v1488 = vpop.f32.mrf.mxu0
      %v1489 = vadd.f32 0.0, %v1488
      %1490 = vmatmul.bf16.gmra.mxu0 %v1455
      %v1491 = vpop.f32.mrf.mxu0
      %v1492 = vadd.f32 0.0, %v1491
      %v1493 = vpop.f32.mrf.mxu0
      %v1494 = vadd.f32 0.0, %v1493
      %1495 = vmatmul.bf16.gmra.mxu0 %v1458
      %v1496 = vpop.f32.mrf.mxu0
      %v1497 = vadd.f32 0.0, %v1496
      %v1498 = vpop.f32.mrf.mxu0
      %v1499 = vadd.f32 0.0, %v1498
      %1500 = vmatmul.bf16.gmra.mxu0 %v1461
      %v1501 = vpop.f32.mrf.mxu0
      %v1502 = vadd.f32 0.0, %v1501
      %v1503 = vpop.f32.mrf.mxu0
      %v1504 = vadd.f32 0.0, %v1503
      %1505 = vmatmul.bf16.gmra.mxu0 %v1464
      %v1506 = vpop.f32.mrf.mxu0
      %v1507 = vadd.f32 0.0, %v1506
      %v1508 = vpop.f32.mrf.mxu0
      %v1509 = vadd.f32 0.0, %v1508
      %1510 = vmatmul.bf16.gmra.mxu0 %v1467
      %v1511 = vpop.f32.mrf.mxu0
      %v1512 = vadd.f32 0.0, %v1511
      %v1513 = vpop.f32.mrf.mxu0
      %v1514 = vadd.f32 0.0, %v1513
      %1515 = vmatmul.bf16.gmra.mxu0 %v1470
      %v1516 = vpop.f32.mrf.mxu0
      %v1517 = vadd.f32 0.0, %v1516
      %v1518 = vpop.f32.mrf.mxu0
      %v1519 = vadd.f32 0.0, %v1518
      %1520 = vdwg.mxu0
      %v1521 = vmax.f32 %v1388, %v1482
      %v1522 = vmax.f32 %v1389, %v1484
      %v1523 = vmax.f32 %v1390, %v1487
      %v1524 = vmax.f32 %v1391, %v1489
      %v1525 = vmax.f32 %v1521, %v1492
      %v1526 = vmax.f32 %v1522, %v1494
      %v1527 = vmax.f32 %v1523, %v1497
      %v1528 = vmax.f32 %v1524, %v1499
      %v1529 = vmax.f32 %v1525, %v1502
      %v1530 = vmax.f32 %v1526, %v1504
      %v1531 = vmax.f32 %v1527, %v1507
      %v1532 = vmax.f32 %v1528, %v1509
      %v1533 = vmax.f32 %v1529, %v1512
      %v1534 = vmax.f32 %v1530, %v1514
      %v1535 = vmax.f32 %v1531, %v1517
      %v1536 = vmax.f32 %v1532, %v1519
      %v1537 = vld [vmem:[%s1 + $0x230] sm:$0xf]
      %v1538 = vld [vmem:[%s1 + $0x234] sm:$0xf]
      %v1539 = vld [vmem:[%s1 + $0x238] sm:$0xf]
      %v1540 = vld [vmem:[%s1 + $0x23c] sm:$0xf]
      %v1541 = vld [vmem:[%s1 + $0x240] sm:$0xf]
      %v1542 = vld [vmem:[%s1 + $0x244] sm:$0xf]
      %v1543 = vld [vmem:[%s1 + $0x248] sm:$0xf]
      %v1544 = vld [vmem:[%s1 + $0x24c] sm:$0xf]
      %v1553 = vunpack.c.l.b16 %v1537
      %v1554 = vunpack.c.l.b16 %v1538
      %v1555 = vunpack.c.l.b16 %v1539
      %v1556 = vunpack.c.l.b16 %v1540
      %v1557 = vunpack.c.l.b16 %v1541
      %v1558 = vunpack.c.l.b16 %v1542
      %v1559 = vunpack.c.l.b16 %v1543
      %v1560 = vunpack.c.l.b16 %v1544
      %v1561 = vpack.c.b16 %v1554, %v1553
      %v1562 = vpack.c.b16 %v1556, %v1555
      %v1563 = vpack.c.b16 %v1558, %v1557
      %v1564 = vpack.c.b16 %v1560, %v1559
      %v1566 = vsel %vm283, %v1561, 0
      %v1569 = vsel %vm283, %v1562, 0
      %v1572 = vsel %vm283, %v1563, 0
      %v1575 = vsel %vm283, %v1564, 0
      %1577 = vmatpush.bf16.msra.mxu0 0
      %1578 = vmatpush.bf16.msra.mxu0 0
      %1579 = vmatpush.bf16.msra.mxu0 0
      %1580 = vmatpush.bf16.msra.mxu0 0
      %1581 = vmatpush.bf16.msra.mxu0 %v226
      %1582 = vmatpush.bf16.msra.mxu0 %v225
      %1583 = vmatpush.bf16.msra.mxu0 %v224
      %1584 = vmatpush.bf16.msra.mxu0 %v223
      %1585 = vmatmul.bf16.gmra.mxu0 %v1566
      %v1586 = vpop.f32.mrf.mxu0
      %v1587 = vadd.f32 0.0, %v1586
      %v1588 = vpop.f32.mrf.mxu0
      %v1589 = vadd.f32 0.0, %v1588
      %1590 = vmatmul.bf16.gmra.mxu0 %v1569
      %v1591 = vpop.f32.mrf.mxu0
      %v1592 = vadd.f32 0.0, %v1591
      %v1593 = vpop.f32.mrf.mxu0
      %v1594 = vadd.f32 0.0, %v1593
      %1595 = vmatmul.bf16.gmra.mxu0 %v1572
      %v1596 = vpop.f32.mrf.mxu0
      %v1597 = vadd.f32 0.0, %v1596
      %v1598 = vpop.f32.mrf.mxu0
      %v1599 = vadd.f32 0.0, %v1598
      %1600 = vmatmul.bf16.gmra.mxu0 %v1575
      %v1601 = vpop.f32.mrf.mxu0
      %v1602 = vadd.f32 0.0, %v1601
      %v1603 = vpop.f32.mrf.mxu0
      %v1604 = vadd.f32 0.0, %v1603
      %1605 = vdwg.mxu0
      %v1606 = vmax.f32 %v1533, %v1587
      %v1607 = vmax.f32 %v1534, %v1589
      %v1608 = vmax.f32 %v1535, %v1592
      %v1609 = vmax.f32 %v1536, %v1594
      %v1610 = vmax.f32 %v1606, %v1597
      %v1611 = vmax.f32 %v1607, %v1599
      %v1612 = vmax.f32 %v1608, %v1602
      %v1613 = vmax.f32 %v1609, %v1604
      %v1614 = vld [vmem:[%s2 + $0x30] sm:$0xff]
      %v1615 = vld [vmem:[%s2 + $0x38] sm:$0xff]
      %v1616 = vld [vmem:[%s2 + $0x40] sm:$0xff]
      %v1617 = vld [vmem:[%s2 + $0x48] sm:$0xff]
      %1619 = vset.pattern.permute.xlu0 0
      %1620 = vperm.xlu0 %1619, %v1614
      %v1621 = vpop.permute.xlu0 %1620
      %1624 = vset.pattern.permute.xlu0 0
      %1625 = vperm.xlu0 %1624, %v1615
      %v1626 = vpop.permute.xlu0 %1625
      %1629 = vset.pattern.permute.xlu0 0
      %1630 = vperm.xlu0 %1629, %v1616
      %v1631 = vpop.permute.xlu0 %1630
      %1634 = vset.pattern.permute.xlu0 0
      %1635 = vperm.xlu0 %1634, %v1617
      %v1636 = vpop.permute.xlu0 %1635
      %v1638 = vadd.f32 %v1610, %v1621
      %v1639 = vadd.f32 %v1611, %v1626
      %v1640 = vadd.f32 %v1612, %v1631
      %v1641 = vadd.f32 %v1613, %v1636
      %v1642 = vtanh.pop %v1638
      %v1643 = vtanh.pop %v1639
      %v1644 = vtanh.pop %v1640
      %v1645 = vtanh.pop %v1641
      %1646 = vxpose.xlu0.b32.start [1/16] %v530, 128
      %1647 = vxpose.xlu0.b32.cont [2/16] %v531, 128
      %1648 = vxpose.xlu0.b32.cont [3/16] %v1102, 128
      %1649 = vxpose.xlu0.b32.cont [4/16] %v1103, 128
      %1650 = vxpose.xlu0.b32.cont [5/16] %v1104, 128
      %1651 = vxpose.xlu0.b32.cont [6/16] %v1105, 128
      %1652 = vxpose.xlu0.b32.cont [7/16] %v1642, 128
      %1653 = vxpose.xlu0.b32.cont [8/16] %v1643, 128
      %1654 = vxpose.xlu0.b32.cont [9/16] %v1644, 128
      %1655 = vxpose.xlu0.b32.cont [10/16] %v1645, 128
      %1656 = vxpose.xlu0.b32.cont [11/16] 0.0, 128
      %1657 = vxpose.xlu0.b32.cont [12/16] 0.0, 128
      %1658 = vxpose.xlu0.b32.cont [13/16] 0.0, 128
      %1659 = vxpose.xlu0.b32.cont [14/16] 0.0, 128
      %1660 = vxpose.xlu0.b32.cont [15/16] 0.0, 128
      %1661 = vxpose.xlu0.b32.end [16/16] 0.0, 128
      %v1662 = vpop.trf.xlu0
      %v1663 = vpop.trf.xlu0
      %v1664 = vpop.trf.xlu0
      %v1665 = vpop.trf.xlu0
      %v1666 = vpop.trf.xlu0
      %v1667 = vpop.trf.xlu0
      %v1668 = vpop.trf.xlu0
      %v1669 = vpop.trf.xlu0
      %v1670 = vpop.trf.xlu0
      %v1671 = vpop.trf.xlu0
      %v1672 = vpop.trf.xlu0
      %v1673 = vpop.trf.xlu0
      %v1674 = vpop.trf.xlu0
      %v1675 = vpop.trf.xlu0
      %v1676 = vpop.trf.xlu0
      %v1677 = vpop.trf.xlu0
      %v1678 = vpack.c.bf16 %v1662, %v1662
      %v1679 = vpack.c.bf16 %v1663, %v1663
      %v1680 = vpack.c.bf16 %v1664, %v1664
      %v1681 = vpack.c.bf16 %v1665, %v1665
      %v1682 = vpack.c.bf16 %v1666, %v1666
      %v1683 = vpack.c.bf16 %v1667, %v1667
      %v1684 = vpack.c.bf16 %v1668, %v1668
      %v1685 = vpack.c.bf16 %v1669, %v1669
      %v1686 = vpack.c.bf16 %v1670, %v1670
      %v1687 = vpack.c.bf16 %v1671, %v1671
      %v1688 = vpack.c.bf16 %v1672, %v1672
      %v1689 = vpack.c.bf16 %v1673, %v1673
      %v1690 = vpack.c.bf16 %v1674, %v1674
      %v1691 = vpack.c.bf16 %v1675, %v1675
      %v1692 = vpack.c.bf16 %v1676, %v1676
      %v1693 = vpack.c.bf16 %v1677, %v1677
      %vm1694 = vcmask 650240
      %1695 = vst.msk [vmem:[%s172] sm:$0xf] %vm1694, %v1678
      %1696 = vst.msk [vmem:[%s172 + $0x4] sm:$0xf] %vm1694, %v1679
      %1697 = vst.msk [vmem:[%s172 + $0x8] sm:$0xf] %vm1694, %v1680
      %1698 = vst.msk [vmem:[%s172 + $0xc] sm:$0xf] %vm1694, %v1681
      %1699 = vst.msk [vmem:[%s172 + $0x10] sm:$0xf] %vm1694, %v1682
      %1700 = vst.msk [vmem:[%s172 + $0x14] sm:$0xf] %vm1694, %v1683
      %1701 = vst.msk [vmem:[%s172 + $0x18] sm:$0xf] %vm1694, %v1684
      %1702 = vst.msk [vmem:[%s172 + $0x1c] sm:$0xf] %vm1694, %v1685
      %1703 = vst.msk [vmem:[%s172 + $0x20] sm:$0xf] %vm1694, %v1686
      %1704 = vst.msk [vmem:[%s172 + $0x24] sm:$0xf] %vm1694, %v1687
      %1705 = vst.msk [vmem:[%s172 + $0x28] sm:$0xf] %vm1694, %v1688
      %1706 = vst.msk [vmem:[%s172 + $0x2c] sm:$0xf] %vm1694, %v1689
      %1707 = vst.msk [vmem:[%s172 + $0x30] sm:$0xf] %vm1694, %v1690
      %1708 = vst.msk [vmem:[%s172 + $0x34] sm:$0xf] %vm1694, %v1691
      %1709 = vst.msk [vmem:[%s172 + $0x38] sm:$0xf] %vm1694, %v1692
      %1710 = vst.msk [vmem:[%s172 + $0x3c] sm:$0xf] %vm1694, %v1693
      %s1711 = smul.u32 16, %s14
      %p1712 = scmp.lt.s32.totalorder %s1711, 63
      %s1713 = scalar_select %p1712, %s1711, 63
      %s1714 = smul.addr %s1713, 4
      %s1715 = scalar_lea.vmem %s3, %s1714
      // Predicated region
      $region33: #{charcnn_forward.1} parent=31 // pred_check
        %p1716 = pneg %p100
      $region34: #{charcnn_forward.1} parent=31 // pred_check_branch
        %1718 = sbr.rel (%p1716) target = $region36
      $region35: #{charcnn_forward.1} parent=31 // pred_region
        %s1719 = smul.u32 16, %s14
      $region36: #{charcnn_forward.1} parent=31 // pred_fallthru
        _
    $region32: #{charcnn_forward.1} parent=5 // pred_fallthru
      _
    %p1720 = scmp.le.s32.totalorder 2, %s9
    // Predicated region
    $region37: #{charcnn_forward.1} parent=5 // pred_check
      %p1721 = pneg %p1720
    $region38: #{charcnn_forward.1} parent=5 // pred_check_branch
      %1723 = sbr.rel (%p1721) target = $region40
    $region39: #{charcnn_forward.1} parent=5 // pred_region
      %s1724 = ssub.s32 %s9, 2
      // Predicated region
      $region41: #{charcnn_forward.1} parent=39 // pred_check
        %p1725 = pneg %p106
      $region42: #{charcnn_forward.1} parent=39 // pred_check_branch
        %1727 = sbr.rel (%p1725) target = $region44
      $region43: #{charcnn_forward.1} parent=39 // pred_region
        %s1728 = smul.u32 16, %s15
        %p1729 = scmp.lt.s32.totalorder %s1728, 63
        %s1730 = scalar_select %p1729, %s1728, 63
        %s1731 = smul.addr %s1730, 4
        %s1732 = scalar_lea.vmem %s3, %s1731
      $region44: #{charcnn_forward.1} parent=39 // pred_fallthru
        _
    $region40: #{charcnn_forward.1} parent=5 // pred_fallthru
      _
  $region6: #{charcnn_forward.1} parent=0 // loop_footer
    %s13 = sadd.s32 1, %s9
  $region7: #{charcnn_forward.1} parent=0 // loop_footer_branch
    %8 = sbr.rel target = $region3
  $region8: #{charcnn_forward.1} parent=0 // loop_exit
    _

</llo_original>
